<compile_context>
chip_gen: v6e
topology: v6e:2x2x1
jax: 0.10.0
libtpu: 0.0.40
codegen_flags: <defaults>
</compile_context>

<pallas_src>
import functools

import numpy as np

import jax
import jax.numpy as jnp
from jax.experimental import pallas as pl
from jax.experimental.pallas import tpu as pltpu


_K = 3   # conv kernel size
_S = 2   # conv stride (padding = 1)


def _out_size(n):
    return (n + 2 - _K) // _S + 1


# ---------------------------------------------------------------------------
# Fused kernel: conv1 + ReLU -> (VMEM-resident f1) -> conv2 + ReLU
# ---------------------------------------------------------------------------
def _fused_two_stage_conv_kernel(x1_ref, w1_ref, b1_ref, sel_ref, w2_ref,
                                 b2_ref, o_ref, x2_ref, *, M2, C1,
                                 compute_dtype):
    """Shapes (all whole-array VMEM blocks, no grid):

      x1_ref : (M1, 9*Cin)  stage-1 im2col, rows ordered (b, i1, j1)
      w1_ref : (9*Cin, C1)  stage-1 weights;            b1_ref : (1, C1)
      sel_ref: (9*M2, M1)   constant 0/1 tap-gather matrices (block t = rows
                            [t*M2, (t+1)*M2)); all-zero rows encode padding
      w2_ref : (9*C1, C2P)  stage-2 weights, C2 zero-padded to 128 lanes
      b2_ref : (1, C2P)
      o_ref  : (M2, C2P)    rows ordered (b, i2, j2)
      x2_ref : (M2, 9*C1)   VMEM scratch: stage-2 K-concatenated im2col operand
    """
    f32 = jnp.float32
    cd = compute_dtype

    # ---- stage 1: ONE matmul over the full K = 9*Cin contraction, batch
    # folded into M (M1 = B*Ho1*Wo1 = 128) -> no per-tap accumulate chain.
    f1 = jnp.dot(x1_ref[...].astype(cd), w1_ref[...].astype(cd),
                 preferred_element_type=f32)
    f1 = jnp.maximum(f1 + b1_ref[...], 0.0)                        # (M1, C1)

    # ---- stage-2 tap gather, executed on the MXU: one 0/1 selection matmul
    # per tap writes its C1-wide column group of the im2col operand.  f1 never
    # leaves VMEM.  (Strided ref indexing is rejected by the Mosaic/interpret
    # discharge path, so the gather is done as matmuls instead of tiny copies.)
    f1c = f1.astype(cd)
    for t in range(_K * _K):
        g = jnp.dot(sel_ref[t * M2:(t + 1) * M2, :].astype(cd), f1c,
                    preferred_element_type=f32)                    # (M2, C1)
        x2_ref[:, t * C1:(t + 1) * C1] = g

    # ---- stage 2: ONE matmul over K = 9*C1 = 144, bias + ReLU, and a single
    # lane-dense (M2, 128) store (full 128-lane vregs, no per-row stores).
    out = jnp.dot(x2_ref[...].astype(cd), w2_ref[...].astype(cd),
                  preferred_element_type=f32)
    o_ref[...] = jnp.maximum(out + b2_ref[...], 0.0).astype(o_ref.dtype)


# ---------------------------------------------------------------------------
# Wrapper-side constant / layout preparation (trace-time, cheap)
# ---------------------------------------------------------------------------
def _build_stage2_selection(B, Ho1, Wo1, Ho2, Wo2):
    """0/1 matrices gathering f1 rows (b,i1,j1) -> stage-2 tap rows (b,i2,j2)."""
    M1 = B * Ho1 * Wo1
    M2 = B * Ho2 * Wo2
    sel = np.zeros((_K * _K * M2, M1), np.float32)
    for dh in range(_K):
        for dw in range(_K):
            t = dh * _K + dw
            for b in range(B):
                for i2 in range(Ho2):
                    i1 = _S * i2 + dh - 1
                    if not (0 <= i1 < Ho1):
                        continue
                    for j2 in range(Wo2):
                        j1 = _S * j2 + dw - 1
                        if not (0 <= j1 < Wo1):
                            continue
                        r = t * M2 + (b * Ho2 + i2) * Wo2 + j2
                        c = (b * Ho1 + i1) * Wo1 + j1
                        sel[r, c] = 1.0        # zero rows == zero padding taps
    return sel


def _im2col_stage1(x_nhwc, Ho1, Wo1):
    """(B,H,W,Cin) -> (B*Ho1*Wo1, 9*Cin), columns ordered (tap, cin)."""
    B, H, W, Cin = x_nhwc.shape
    xp = jnp.pad(x_nhwc, ((0, 0), (1, 1), (1, 1), (0, 0)))
    cols = []
    for dh in range(_K):
        for dw in range(_K):
            patch = xp[:, dh:dh + _S * Ho1:_S, dw:dw + _S * Wo1:_S, :]
            cols.append(patch.reshape(B * Ho1 * Wo1, Cin))
    return jnp.concatenate(cols, axis=1)


# ---------------------------------------------------------------------------
# Single fused pallas_call (no grid: batch folded into the matmul M dimension)
# ---------------------------------------------------------------------------
def _fused_backbone_last_feature(params, x_nchw, compute_dtype=jnp.float32):
    B, Cin, H, W = x_nchw.shape
    kh, kw, _, C1 = params["w1"].shape
    _, _, _, C2 = params["w2"].shape
    assert (kh, kw) == (_K, _K)

    Ho1, Wo1 = _out_size(H), _out_size(W)
    Ho2, Wo2 = _out_size(Ho1), _out_size(Wo1)
    M1 = B * Ho1 * Wo1
    M2 = B * Ho2 * Wo2
    K1 = _K * _K * Cin
    K2 = _K * _K * C1
    C2P = ((C2 + 127) // 128) * 128          # lane-dense (multiple-of-128) output

    # Layout prep (XLA, once): NCHW -> NHWC -> stage-1 im2col.
    x_nhwc = jnp.transpose(x_nchw, (0, 2, 3, 1))
    x1 = _im2col_stage1(x_nhwc, Ho1, Wo1)                        # (M1, K1)

    w1cat = params["w1"].reshape(K1, C1)                         # (36, 16)
    b1row = params["b1"].reshape(1, C1)
    w2cat = jnp.pad(params["w2"].reshape(K2, C2),
                    ((0, 0), (0, C2P - C2)))                     # (144, 128)
    b2row = jnp.pad(params["b2"], (0, C2P - C2)).reshape(1, C2P)
    sel = jnp.asarray(_build_stage2_selection(B, Ho1, Wo1, Ho2, Wo2))  # (9*M2, M1)

    kernel = functools.partial(_fused_two_stage_conv_kernel,
                               M2=M2, C1=C1, compute_dtype=compute_dtype)

    # Advisory cost (real conv FLOPs: C2, not the padded C2P -- review item 11).
    flops = 2 * (M1 * K1 * C1 + M2 * K2 * C2)
    bytes_accessed = 4 * (x1.size + w1cat.size + b1row.size + sel.size
                          + w2cat.size + b2row.size + M2 * C2P)

    vmem = pl.BlockSpec(memory_space=pltpu.MemorySpace.VMEM)
    out2d = pl.pallas_call(
        kernel,
        out_shape=jax.ShapeDtypeStruct((M2, C2P), jnp.float32),
        in_specs=[vmem] * 6,
        out_specs=vmem,
        scratch_shapes=[pltpu.VMEM((M2, K2), jnp.float32)],
        compiler_params=pltpu.CompilerParams(
            # Total VMEM footprint here is ~300 KiB; limit stays well inside
            # v7x's 64 MiB physical VMEM.
            vmem_limit_bytes=32 * 1024 * 1024),
        cost_estimate=pl.CostEstimate(
            flops=flops, transcendentals=0, bytes_accessed=bytes_accessed),
    )(x1, w1cat, b1row, sel, w2cat, b2row)

    # Drop the zero channel padding; back to NCHW (PyTorch convention).
    out = out2d[:, :C2].reshape(B, Ho2, Wo2, C2)
    return jnp.transpose(out, (0, 3, 1, 2))


# ---------------------------------------------------------------------------
# Synthetic "timm" backbone params + wrapper-equivalent forward
# ---------------------------------------------------------------------------
def init_params(key, cin=4, c1=16, c2=32):
    k1, k2, k3, k4 = jax.random.split(key, 4)
    return {
        "w1": jax.random.normal(k1, (3, 3, cin, c1), jnp.float32) * 0.1,
        "b1": jax.random.normal(k2, (c1,), jnp.float32) * 0.01,
        "w2": jax.random.normal(k3, (3, 3, c1, c2), jnp.float32) * 0.1,
        "b2": jax.random.normal(k4, (c2,), jnp.float32) * 0.01,
    }


@functools.partial(jax.jit, static_argnames=("compute_dtype",))
def timm_feature_extractor_wrapper_forward(params, x_nchw,
                                           compute_dtype=jnp.float32):
    """TimmFeatureExtractorWrapper.forward: run the backbone, return features[-1].

    Both backbone stages are fused into a single Pallas kernel; since only the
    last feature map is returned, the stage-1 feature map stays purely in VMEM.
    compute_dtype=jnp.bfloat16 feeds the MXU in bf16 (f32 accumulation) -- the
    recommended setting for v6e/v7x once the kernel is matmul-bound.
    """
    return _fused_backbone_last_feature(params, x_nchw,
                                        compute_dtype=compute_dtype)


# ---------------------------------------------------------------------------
if __name__ == "__main__":
    key = jax.random.PRNGKey(0)
    pkey, xkey = jax.random.split(key)

    params = init_params(pkey, cin=4, c1=16, c2=32)
    x = jax.random.normal(xkey, (2, 4, 16, 16), jnp.float32)     # NCHW input

    out = jax.block_until_ready(timm_feature_extractor_wrapper_forward(params, x))

    # Pure-JAX reference (lax conv, full f32 precision) for correctness.
    def ref_conv(x_nchw, w_khkwcico, b):
        w_oihw = jnp.transpose(w_khkwcico, (3, 2, 0, 1))
        y = jax.lax.conv_general_dilated(
            x_nchw, w_oihw, window_strides=(2, 2), padding=((1, 1), (1, 1)),
            dimension_numbers=("NCHW", "OIHW", "NCHW"),
            precision=jax.lax.Precision.HIGHEST)
        return jnp.maximum(y + b[None, :, None, None], 0.0)

    ref = ref_conv(ref_conv(x, params["w1"], params["b1"]),
                   params["w2"], params["b2"])

    assert out.shape == (2, 32, 4, 4), out.shape
    # Tolerance covers XLA's default f32->bf16 matmul demotion on TPU in
    # interpret/fallback paths; the kernel itself accumulates in f32 and any
    # structural (tap-ordering / padding) bug would produce O(0.1+) errors.
    assert jnp.allclose(out, ref, atol=2e-2, rtol=2e-2), (
        float(jnp.max(jnp.abs(out - ref))))

    # Optional bf16 MXU feed (v6e/v7x recommendation): same kernel, operands
    # cast to bf16 only at the dots (f32 accumulation).  Loose numerical check.
    out_bf16 = jax.block_until_ready(
        timm_feature_extractor_wrapper_forward(
            params, x, compute_dtype=jnp.bfloat16))
    assert out_bf16.shape == (2, 32, 4, 4)
    assert jnp.allclose(out_bf16, ref, atol=1e-1, rtol=1e-1)

    print("KERNEL_OK")
</pallas_src>

<mosaic_0001>
module attributes {stable_mosaic.version = 11 : i64} {
  func.func @_fused_two_stage_conv_kernel(%arg0: memref<128x36xf32, #tpu.memory_space<vmem>>, %arg1: memref<36x16xf32, #tpu.memory_space<vmem>>, %arg2: memref<1x16xf32, #tpu.memory_space<vmem>>, %arg3: memref<288x128xf32, #tpu.memory_space<vmem>>, %arg4: memref<144x128xf32, #tpu.memory_space<vmem>>, %arg5: memref<1x128xf32, #tpu.memory_space<vmem>>, %arg6: memref<32x128xf32, #tpu.memory_space<vmem>>, %arg7: memref<32x144xf32, #tpu.memory_space<vmem>>) attributes {dimension_semantics = [], scalar_prefetch = 0 : i64, scratch_operands = 1 : i64, tpu.core_type = #tpu.core_type<tc>} {
    %c0 = arith.constant 0 : index
    %c0_0 = arith.constant 0 : index
    %0 = vector.load %arg0[%c0, %c0_0] : memref<128x36xf32, #tpu.memory_space<vmem>>, vector<128x36xf32>
    %c0_1 = arith.constant 0 : index
    %c0_2 = arith.constant 0 : index
    %1 = vector.load %arg1[%c0_1, %c0_2] : memref<36x16xf32, #tpu.memory_space<vmem>>, vector<36x16xf32>
    %cst = arith.constant dense<0.000000e+00> : vector<128x16xf32>
    %2 = tpu.matmul %0, %1, %cst {dimension_numbers = #tpu.dot_dimension_numbers<[1], [0], [0], [1], [0, 0, 1, 1], [], []>} : vector<128x36xf32>, vector<36x16xf32>, vector<128x16xf32> -> vector<128x16xf32>
    %c0_3 = arith.constant 0 : index
    %c0_4 = arith.constant 0 : index
    %3 = vector.load %arg2[%c0_3, %c0_4] : memref<1x16xf32, #tpu.memory_space<vmem>>, vector<1x16xf32>
    %4 = vector.broadcast %3 : vector<1x16xf32> to vector<128x16xf32>
    %5 = arith.addf %2, %4 : vector<128x16xf32>
    %cst_5 = arith.constant 0.000000e+00 : f32
    %6 = vector.broadcast %cst_5 : f32 to vector<128x16xf32>
    %7 = arith.maximumf %5, %6 : vector<128x16xf32>
    %c0_6 = arith.constant 0 : index
    %c0_7 = arith.constant 0 : index
    %8 = vector.load %arg3[%c0_6, %c0_7] : memref<288x128xf32, #tpu.memory_space<vmem>>, vector<32x128xf32>
    %cst_8 = arith.constant dense<0.000000e+00> : vector<32x16xf32>
    %9 = tpu.matmul %8, %7, %cst_8 {dimension_numbers = #tpu.dot_dimension_numbers<[1], [0], [0], [1], [0, 0, 1, 1], [], []>} : vector<32x128xf32>, vector<128x16xf32>, vector<32x16xf32> -> vector<32x16xf32>
    %c0_9 = arith.constant 0 : index
    %c0_10 = arith.constant 0 : index
    %10 = vector.load %arg7[%c0_9, %c0_10] : memref<32x144xf32, #tpu.memory_space<vmem>>, vector<32x16xf32>
    tpu.vector_store %arg7[%c0_9, %c0_10], %9 {strides = array<i32>} : memref<32x144xf32, #tpu.memory_space<vmem>>, vector<32x16xf32>,
    %c32 = arith.constant 32 : index
    %c0_11 = arith.constant 0 : index
    %11 = vector.load %arg3[%c32, %c0_11] : memref<288x128xf32, #tpu.memory_space<vmem>>, vector<32x128xf32>
    %cst_12 = arith.constant dense<0.000000e+00> : vector<32x16xf32>
    %12 = tpu.matmul %11, %7, %cst_12 {dimension_numbers = #tpu.dot_dimension_numbers<[1], [0], [0], [1], [0, 0, 1, 1], [], []>} : vector<32x128xf32>, vector<128x16xf32>, vector<32x16xf32> -> vector<32x16xf32>
    %c0_13 = arith.constant 0 : index
    %c16 = arith.constant 16 : index
    %13 = vector.load %arg7[%c0_13, %c16] : memref<32x144xf32, #tpu.memory_space<vmem>>, vector<32x16xf32>
    tpu.vector_store %arg7[%c0_13, %c16], %12 {strides = array<i32>} : memref<32x144xf32, #tpu.memory_space<vmem>>, vector<32x16xf32>,
    %c64 = arith.constant 64 : index
    %c0_14 = arith.constant 0 : index
    %14 = vector.load %arg3[%c64, %c0_14] : memref<288x128xf32, #tpu.memory_space<vmem>>, vector<32x128xf32>
    %cst_15 = arith.constant dense<0.000000e+00> : vector<32x16xf32>
    %15 = tpu.matmul %14, %7, %cst_15 {dimension_numbers = #tpu.dot_dimension_numbers<[1], [0], [0], [1], [0, 0, 1, 1], [], []>} : vector<32x128xf32>, vector<128x16xf32>, vector<32x16xf32> -> vector<32x16xf32>
    %c0_16 = arith.constant 0 : index
    %c32_17 = arith.constant 32 : index
    %16 = vector.load %arg7[%c0_16, %c32_17] : memref<32x144xf32, #tpu.memory_space<vmem>>, vector<32x16xf32>
    tpu.vector_store %arg7[%c0_16, %c32_17], %15 {strides = array<i32>} : memref<32x144xf32, #tpu.memory_space<vmem>>, vector<32x16xf32>,
    %c96 = arith.constant 96 : index
    %c0_18 = arith.constant 0 : index
    %17 = vector.load %arg3[%c96, %c0_18] : memref<288x128xf32, #tpu.memory_space<vmem>>, vector<32x128xf32>
    %cst_19 = arith.constant dense<0.000000e+00> : vector<32x16xf32>
    %18 = tpu.matmul %17, %7, %cst_19 {dimension_numbers = #tpu.dot_dimension_numbers<[1], [0], [0], [1], [0, 0, 1, 1], [], []>} : vector<32x128xf32>, vector<128x16xf32>, vector<32x16xf32> -> vector<32x16xf32>
    %c0_20 = arith.constant 0 : index
    %c48 = arith.constant 48 : index
    %19 = vector.load %arg7[%c0_20, %c48] : memref<32x144xf32, #tpu.memory_space<vmem>>, vector<32x16xf32>
    tpu.vector_store %arg7[%c0_20, %c48], %18 {strides = array<i32>} : memref<32x144xf32, #tpu.memory_space<vmem>>, vector<32x16xf32>,
    %c128 = arith.constant 128 : index
    %c0_21 = arith.constant 0 : index
    %20 = vector.load %arg3[%c128, %c0_21] : memref<288x128xf32, #tpu.memory_space<vmem>>, vector<32x128xf32>
    %cst_22 = arith.constant dense<0.000000e+00> : vector<32x16xf32>
    %21 = tpu.matmul %20, %7, %cst_22 {dimension_numbers = #tpu.dot_dimension_numbers<[1], [0], [0], [1], [0, 0, 1, 1], [], []>} : vector<32x128xf32>, vector<128x16xf32>, vector<32x16xf32> -> vector<32x16xf32>
    %c0_23 = arith.constant 0 : index
    %c64_24 = arith.constant 64 : index
    %22 = vector.load %arg7[%c0_23, %c64_24] : memref<32x144xf32, #tpu.memory_space<vmem>>, vector<32x16xf32>
    tpu.vector_store %arg7[%c0_23, %c64_24], %21 {strides = array<i32>} : memref<32x144xf32, #tpu.memory_space<vmem>>, vector<32x16xf32>,
    %c160 = arith.constant 160 : index
    %c0_25 = arith.constant 0 : index
    %23 = vector.load %arg3[%c160, %c0_25] : memref<288x128xf32, #tpu.memory_space<vmem>>, vector<32x128xf32>
    %cst_26 = arith.constant dense<0.000000e+00> : vector<32x16xf32>
    %24 = tpu.matmul %23, %7, %cst_26 {dimension_numbers = #tpu.dot_dimension_numbers<[1], [0], [0], [1], [0, 0, 1, 1], [], []>} : vector<32x128xf32>, vector<128x16xf32>, vector<32x16xf32> -> vector<32x16xf32>
    %c0_27 = arith.constant 0 : index
    %c80 = arith.constant 80 : index
    %25 = vector.load %arg7[%c0_27, %c80] : memref<32x144xf32, #tpu.memory_space<vmem>>, vector<32x16xf32>
    tpu.vector_store %arg7[%c0_27, %c80], %24 {strides = array<i32>} : memref<32x144xf32, #tpu.memory_space<vmem>>, vector<32x16xf32>,
    %c192 = arith.constant 192 : index
    %c0_28 = arith.constant 0 : index
    %26 = vector.load %arg3[%c192, %c0_28] : memref<288x128xf32, #tpu.memory_space<vmem>>, vector<32x128xf32>
    %cst_29 = arith.constant dense<0.000000e+00> : vector<32x16xf32>
    %27 = tpu.matmul %26, %7, %cst_29 {dimension_numbers = #tpu.dot_dimension_numbers<[1], [0], [0], [1], [0, 0, 1, 1], [], []>} : vector<32x128xf32>, vector<128x16xf32>, vector<32x16xf32> -> vector<32x16xf32>
    %c0_30 = arith.constant 0 : index
    %c96_31 = arith.constant 96 : index
    %28 = vector.load %arg7[%c0_30, %c96_31] : memref<32x144xf32, #tpu.memory_space<vmem>>, vector<32x16xf32>
    tpu.vector_store %arg7[%c0_30, %c96_31], %27 {strides = array<i32>} : memref<32x144xf32, #tpu.memory_space<vmem>>, vector<32x16xf32>,
    %c224 = arith.constant 224 : index
    %c0_32 = arith.constant 0 : index
    %29 = vector.load %arg3[%c224, %c0_32] : memref<288x128xf32, #tpu.memory_space<vmem>>, vector<32x128xf32>
    %cst_33 = arith.constant dense<0.000000e+00> : vector<32x16xf32>
    %30 = tpu.matmul %29, %7, %cst_33 {dimension_numbers = #tpu.dot_dimension_numbers<[1], [0], [0], [1], [0, 0, 1, 1], [], []>} : vector<32x128xf32>, vector<128x16xf32>, vector<32x16xf32> -> vector<32x16xf32>
    %c0_34 = arith.constant 0 : index
    %c112 = arith.constant 112 : index
    %31 = vector.load %arg7[%c0_34, %c112] : memref<32x144xf32, #tpu.memory_space<vmem>>, vector<32x16xf32>
    tpu.vector_store %arg7[%c0_34, %c112], %30 {strides = array<i32>} : memref<32x144xf32, #tpu.memory_space<vmem>>, vector<32x16xf32>,
    %c256 = arith.constant 256 : index
    %c0_35 = arith.constant 0 : index
    %32 = vector.load %arg3[%c256, %c0_35] : memref<288x128xf32, #tpu.memory_space<vmem>>, vector<32x128xf32>
    %cst_36 = arith.constant dense<0.000000e+00> : vector<32x16xf32>
    %33 = tpu.matmul %32, %7, %cst_36 {dimension_numbers = #tpu.dot_dimension_numbers<[1], [0], [0], [1], [0, 0, 1, 1], [], []>} : vector<32x128xf32>, vector<128x16xf32>, vector<32x16xf32> -> vector<32x16xf32>
    %c0_37 = arith.constant 0 : index
    %c128_38 = arith.constant 128 : index
    %34 = vector.load %arg7[%c0_37, %c128_38] : memref<32x144xf32, #tpu.memory_space<vmem>>, vector<32x16xf32>
    tpu.vector_store %arg7[%c0_37, %c128_38], %33 {strides = array<i32>} : memref<32x144xf32, #tpu.memory_space<vmem>>, vector<32x16xf32>,
    %c0_39 = arith.constant 0 : index
    %c0_40 = arith.constant 0 : index
    %35 = vector.load %arg7[%c0_39, %c0_40] : memref<32x144xf32, #tpu.memory_space<vmem>>, vector<32x144xf32>
    %c0_41 = arith.constant 0 : index
    %c0_42 = arith.constant 0 : index
    %36 = vector.load %arg4[%c0_41, %c0_42] : memref<144x128xf32, #tpu.memory_space<vmem>>, vector<144x128xf32>
    %cst_43 = arith.constant dense<0.000000e+00> : vector<32x128xf32>
    %37 = tpu.matmul %35, %36, %cst_43 {dimension_numbers = #tpu.dot_dimension_numbers<[1], [0], [0], [1], [0, 0, 1, 1], [], []>} : vector<32x144xf32>, vector<144x128xf32>, vector<32x128xf32> -> vector<32x128xf32>
    %c0_44 = arith.constant 0 : index
    %c0_45 = arith.constant 0 : index
    %38 = vector.load %arg5[%c0_44, %c0_45] : memref<1x128xf32, #tpu.memory_space<vmem>>, vector<1x128xf32>
    %39 = vector.broadcast %38 : vector<1x128xf32> to vector<32x128xf32>
    %40 = arith.addf %37, %39 : vector<32x128xf32>
    %cst_46 = arith.constant 0.000000e+00 : f32
    %41 = vector.broadcast %cst_46 : f32 to vector<32x128xf32>
    %42 = arith.maximumf %40, %41 : vector<32x128xf32>
    %c0_47 = arith.constant 0 : index
    %c0_48 = arith.constant 0 : index
    %43 = vector.load %arg6[%c0_47, %c0_48] : memref<32x128xf32, #tpu.memory_space<vmem>>, vector<32x128xf32>
    tpu.vector_store %arg6[%c0_47, %c0_48], %42 {strides = array<i32>} : memref<32x128xf32, #tpu.memory_space<vmem>>, vector<32x128xf32>,
    return
  }
}

</mosaic_0001>

<llo_original>
// kernel: timm_feature_extractor_wrapper_forward.1
$region0: #{timm_feature_extractor_wrapper_forward.1}
  #allocation0 [shape = 'u32[]', space=smem, size = 0x4, offset = 0x4, fixed_abs, tag = 'smem constant byte address 0x4 - core index']
  #allocation1 [shape = 'u32[144,128]{1,0:T(1,128)}', space=vmem, size = 0x12000, scoped, tag = 'internal scratch']
  #allocation2 [shape = 'f32[32,144]{1,0:T(8,128)}', space=vmem, size = 0x8000, scoped, tag = 'scratch operand']
  %s0 = inlined_call_operand.vmem [shape: f32[128,36], index: 0, kind: input, shape index: {}]
  %s1 = inlined_call_operand.vmem [shape: f32[36,16], index: 1, kind: input, shape index: {}]
  %s2 = inlined_call_operand.vmem [shape: f32[1,16], index: 2, kind: input, shape index: {}]
  %s3 = inlined_call_operand.vmem [shape: f32[288,128], index: 3, kind: input, shape index: {}]
  %s4 = inlined_call_operand.vmem [shape: f32[144,128], index: 4, kind: input, shape index: {}]
  %s5 = inlined_call_operand.vmem [shape: f32[1,128], index: 5, kind: input, shape index: {}]
  %s6 = inlined_call_operand.hbm [shape: f32[32,128], index: 6, kind: output, shape index: {}]
  %s7 = sld [smem:[#allocation0]]
  $region34: #{timm_feature_extractor_wrapper_forward.1} parent=0
    _
  %s9 = ssub.s32 1, %s7
  %s10 = scalar_select 0, %s9, %s7
  $region1: #{timm_feature_extractor_wrapper_forward.1} parent=0
    #allocation3 [shape = 'u8[16384]{0}', space=vmem, size = 0x4000, scoped, tag = 'output window, operand 0, single buffered']
    #allocation4 [shape = 's32[1]{0}', space=sflag, size = 0x4, scoped, tag = 'scoped memory for timm_feature_extractor_wrapper_forward.1']
    %11 = vsyncpa [#allocation4], 0
    // Predicated region
    $region2: #{timm_feature_extractor_wrapper_forward.1} parent=1 // pred_check
      _
    $region3: #{timm_feature_extractor_wrapper_forward.1} parent=1 // pred_check_branch
      %13 = sbr.rel (0) target = $region5
    $region4: #{timm_feature_extractor_wrapper_forward.1} parent=1 // pred_region
      _
    $region5: #{timm_feature_extractor_wrapper_forward.1} parent=1 // pred_fallthru
      _
    // Predicated region
    $region6: #{timm_feature_extractor_wrapper_forward.1} parent=1 // pred_check
      _
    $region7: #{timm_feature_extractor_wrapper_forward.1} parent=1 // pred_check_branch
      %15 = sbr.rel (0) target = $region9
    $region8: #{timm_feature_extractor_wrapper_forward.1} parent=1 // pred_region
      _
    $region9: #{timm_feature_extractor_wrapper_forward.1} parent=1 // pred_fallthru
      _
    // Predicated region
    $region10: #{timm_feature_extractor_wrapper_forward.1} parent=1 // pred_check
      _
    $region11: #{timm_feature_extractor_wrapper_forward.1} parent=1 // pred_check_branch
      %17 = sbr.rel (0) target = $region13
    $region12: #{timm_feature_extractor_wrapper_forward.1} parent=1 // pred_region
      _
    $region13: #{timm_feature_extractor_wrapper_forward.1} parent=1 // pred_fallthru
      _
    // Predicated region
    $region14: #{timm_feature_extractor_wrapper_forward.1} parent=1 // pred_check
      _
    $region15: #{timm_feature_extractor_wrapper_forward.1} parent=1 // pred_check_branch
      %19 = sbr.rel (0) target = $region17
    $region16: #{timm_feature_extractor_wrapper_forward.1} parent=1 // pred_region
      _
    $region17: #{timm_feature_extractor_wrapper_forward.1} parent=1 // pred_fallthru
      _
    // Predicated region
    $region18: #{timm_feature_extractor_wrapper_forward.1} parent=1 // pred_check
      _
    $region19: #{timm_feature_extractor_wrapper_forward.1} parent=1 // pred_check_branch
      %21 = sbr.rel (0) target = $region21
    $region20: #{timm_feature_extractor_wrapper_forward.1} parent=1 // pred_region
      _
    $region21: #{timm_feature_extractor_wrapper_forward.1} parent=1 // pred_fallthru
      _
    // Predicated region
    $region22: #{timm_feature_extractor_wrapper_forward.1} parent=1 // pred_check
      _
    $region23: #{timm_feature_extractor_wrapper_forward.1} parent=1 // pred_check_branch
      %23 = sbr.rel (0) target = $region25
    $region24: #{timm_feature_extractor_wrapper_forward.1} parent=1 // pred_region
      _
    $region25: #{timm_feature_extractor_wrapper_forward.1} parent=1 // pred_fallthru
      _
    %v24 = vld [vmem:[%s0] sm:$0xff]
    %v25 = vld [vmem:[%s0 + $0x8] sm:$0xff]
    %v26 = vld [vmem:[%s0 + $0x10] sm:$0xff]
    %v27 = vld [vmem:[%s0 + $0x18] sm:$0xff]
    %v28 = vld [vmem:[%s0 + $0x20] sm:$0xff]
    %v29 = vld [vmem:[%s0 + $0x28] sm:$0xff]
    %v30 = vld [vmem:[%s0 + $0x30] sm:$0xff]
    %v31 = vld [vmem:[%s0 + $0x38] sm:$0xff]
    %v32 = vld [vmem:[%s0 + $0x40] sm:$0xff]
    %v33 = vld [vmem:[%s0 + $0x48] sm:$0xff]
    %v34 = vld [vmem:[%s0 + $0x50] sm:$0xff]
    %v35 = vld [vmem:[%s0 + $0x58] sm:$0xff]
    %v36 = vld [vmem:[%s0 + $0x60] sm:$0xff]
    %v37 = vld [vmem:[%s0 + $0x68] sm:$0xff]
    %v38 = vld [vmem:[%s0 + $0x70] sm:$0xff]
    %v39 = vld [vmem:[%s0 + $0x78] sm:$0xff]
    %v40 = vld [vmem:[%s1] sm:$0xff]
    %v41 = vld [vmem:[%s1 + $0x8] sm:$0xff]
    %v42 = vld [vmem:[%s1 + $0x10] sm:$0xff]
    %v43 = vld [vmem:[%s1 + $0x18] sm:$0xff]
    %v44 = vld [vmem:[%s1 + $0x20] sm:$0xf]
    %v45 = vld [vmem:[%s2] sm:$0x1]
    %v47 = vlaneseq
    %v48 = vshrl.u32 %v47, 7
    %v49 = vsub.s32 0, %v48
    %v50 = vrot.slane %v45, %v49
    %vm52 = vcmask 293888
    %v54 = vsel %vm52, %v24, 0
    %v57 = vsel %vm52, %v25, 0
    %v60 = vsel %vm52, %v26, 0
    %v63 = vsel %vm52, %v27, 0
    %v66 = vsel %vm52, %v28, 0
    %v69 = vsel %vm52, %v29, 0
    %v72 = vsel %vm52, %v30, 0
    %v75 = vsel %vm52, %v31, 0
    %v78 = vsel %vm52, %v32, 0
    %v81 = vsel %vm52, %v33, 0
    %v84 = vsel %vm52, %v34, 0
    %v87 = vsel %vm52, %v35, 0
    %v90 = vsel %vm52, %v36, 0
    %v93 = vsel %vm52, %v37, 0
    %v96 = vsel %vm52, %v38, 0
    %v99 = vsel %vm52, %v39, 0
    %vm101 = vcmask 1043456
    %v103 = vsel %vm101, %v44, 0
    %105 = vmatprep.subr.mxu0 0.0
    %106 = vmatpush1.msra.mxu0 0.0
    %107 = vmatprep.subr.mxu0 0.0
    %108 = vmatpush1.msra.mxu0 0.0
    %109 = vmatprep.subr.mxu0 0.0
    %110 = vmatpush1.msra.mxu0 0.0
    %111 = vmatprep.subr.mxu0 0.0
    %112 = vmatpush1.msra.mxu0 0.0
    %113 = vmatprep.subr.mxu0 0.0
    %114 = vmatpush1.msra.mxu0 0.0
    %115 = vmatprep.subr.mxu0 0.0
    %116 = vmatpush1.msra.mxu0 0.0
    %117 = vmatprep.subr.mxu0 0.0
    %118 = vmatpush1.msra.mxu0 0.0
    %119 = vmatprep.subr.mxu0 0.0
    %120 = vmatpush1.msra.mxu0 0.0
    %121 = vmatprep.subr.mxu0 0.0
    %122 = vmatpush1.msra.mxu0 0.0
    %123 = vmatprep.subr.mxu0 0.0
    %124 = vmatpush1.msra.mxu0 0.0
    %125 = vmatprep.subr.mxu0 0.0
    %126 = vmatpush1.msra.mxu0 0.0
    %127 = vmatprep.subr.mxu0 0.0
    %128 = vmatpush1.msra.mxu0 %v103
    %129 = vmatprep.subr.mxu0 0.0
    %130 = vmatpush1.msra.mxu0 %v43
    %131 = vmatprep.subr.mxu0 0.0
    %132 = vmatpush1.msra.mxu0 %v42
    %133 = vmatprep.subr.mxu0 0.0
    %134 = vmatpush1.msra.mxu0 %v41
    %135 = vmatprep.subr.mxu0 0.0
    %136 = vmatpush1.msra.mxu0 %v40
    %137 = vmatprep.subr.mxu0 0.0
    %138 = vmatpush2.msra.mxu0 0.0
    %139 = vmatprep.subr.mxu0 0.0
    %140 = vmatpush2.msra.mxu0 0.0
    %141 = vmatprep.subr.mxu0 0.0
    %142 = vmatpush2.msra.mxu0 0.0
    %143 = vmatprep.subr.mxu0 0.0
    %144 = vmatpush2.msra.mxu0 0.0
    %145 = vmatprep.subr.mxu0 0.0
    %146 = vmatpush2.msra.mxu0 0.0
    %147 = vmatprep.subr.mxu0 0.0
    %148 = vmatpush2.msra.mxu0 0.0
    %149 = vmatprep.subr.mxu0 0.0
    %150 = vmatpush2.msra.mxu0 0.0
    %151 = vmatprep.subr.mxu0 0.0
    %152 = vmatpush2.msra.mxu0 0.0
    %153 = vmatprep.subr.mxu0 0.0
    %154 = vmatpush2.msra.mxu0 0.0
    %155 = vmatprep.subr.mxu0 0.0
    %156 = vmatpush2.msra.mxu0 0.0
    %157 = vmatprep.subr.mxu0 0.0
    %158 = vmatpush2.msra.mxu0 0.0
    %159 = vmatprep.subr.mxu0 0.0
    %160 = vmatpush2.msra.mxu0 0.0
    %161 = vmatprep.subr.mxu0 0.0
    %162 = vmatpush2.msra.mxu0 0.0
    %163 = vmatprep.subr.mxu0 0.0
    %164 = vmatpush2.msra.mxu0 0.0
    %165 = vmatprep.subr.mxu0 0.0
    %166 = vmatpush2.msra.mxu0 0.0
    %167 = vmatprep.subr.mxu0 0.0
    %168 = vmatpush2.msra.mxu0 0.0
    %169 = vmatprep.mubr.f32.mxu0 0.0
    %170 = vmatmul.mubr.f32.gmra.mxu0 %v54
    %v171 = vpop.f32.mrf.mxu0
    %v172 = vadd.f32 %v50, %v171
    %v173 = vpop.f32.mrf.mxu0
    %174 = vmatprep.mubr.f32.mxu0 0.0
    %175 = vmatmul.mubr.f32.gmra.mxu0 %v57
    %v176 = vpop.f32.mrf.mxu0
    %v177 = vadd.f32 %v50, %v176
    %v178 = vpop.f32.mrf.mxu0
    %179 = vmatprep.mubr.f32.mxu0 0.0
    %180 = vmatmul.mubr.f32.gmra.mxu0 %v60
    %v181 = vpop.f32.mrf.mxu0
    %v182 = vadd.f32 %v50, %v181
    %v183 = vpop.f32.mrf.mxu0
    %184 = vmatprep.mubr.f32.mxu0 0.0
    %185 = vmatmul.mubr.f32.gmra.mxu0 %v63
    %v186 = vpop.f32.mrf.mxu0
    %v187 = vadd.f32 %v50, %v186
    %v188 = vpop.f32.mrf.mxu0
    %189 = vmatprep.mubr.f32.mxu0 0.0
    %190 = vmatmul.mubr.f32.gmra.mxu0 %v66
    %v191 = vpop.f32.mrf.mxu0
    %v192 = vadd.f32 %v50, %v191
    %v193 = vpop.f32.mrf.mxu0
    %194 = vmatprep.mubr.f32.mxu0 0.0
    %195 = vmatmul.mubr.f32.gmra.mxu0 %v69
    %v196 = vpop.f32.mrf.mxu0
    %v197 = vadd.f32 %v50, %v196
    %v198 = vpop.f32.mrf.mxu0
    %199 = vmatprep.mubr.f32.mxu0 0.0
    %200 = vmatmul.mubr.f32.gmra.mxu0 %v72
    %v201 = vpop.f32.mrf.mxu0
    %v202 = vadd.f32 %v50, %v201
    %v203 = vpop.f32.mrf.mxu0
    %204 = vmatprep.mubr.f32.mxu0 0.0
    %205 = vmatmul.mubr.f32.gmra.mxu0 %v75
    %v206 = vpop.f32.mrf.mxu0
    %v207 = vadd.f32 %v50, %v206
    %v208 = vpop.f32.mrf.mxu0
    %209 = vmatprep.mubr.f32.mxu0 0.0
    %210 = vmatmul.mubr.f32.gmra.mxu0 %v78
    %v211 = vpop.f32.mrf.mxu0
    %v212 = vadd.f32 %v50, %v211
    %v213 = vpop.f32.mrf.mxu0
    %214 = vmatprep.mubr.f32.mxu0 0.0
    %215 = vmatmul.mubr.f32.gmra.mxu0 %v81
    %v216 = vpop.f32.mrf.mxu0
    %v217 = vadd.f32 %v50, %v216
    %v218 = vpop.f32.mrf.mxu0
    %219 = vmatprep.mubr.f32.mxu0 0.0
    %220 = vmatmul.mubr.f32.gmra.mxu0 %v84
    %v221 = vpop.f32.mrf.mxu0
    %v222 = vadd.f32 %v50, %v221
    %v223 = vpop.f32.mrf.mxu0
    %224 = vmatprep.mubr.f32.mxu0 0.0
    %225 = vmatmul.mubr.f32.gmra.mxu0 %v87
    %v226 = vpop.f32.mrf.mxu0
    %v227 = vadd.f32 %v50, %v226
    %v228 = vpop.f32.mrf.mxu0
    %229 = vmatprep.mubr.f32.mxu0 0.0
    %230 = vmatmul.mubr.f32.gmra.mxu0 %v90
    %v231 = vpop.f32.mrf.mxu0
    %v232 = vadd.f32 %v50, %v231
    %v233 = vpop.f32.mrf.mxu0
    %234 = vmatprep.mubr.f32.mxu0 0.0
    %235 = vmatmul.mubr.f32.gmra.mxu0 %v93
    %v236 = vpop.f32.mrf.mxu0
    %v237 = vadd.f32 %v50, %v236
    %v238 = vpop.f32.mrf.mxu0
    %239 = vmatprep.mubr.f32.mxu0 0.0
    %240 = vmatmul.mubr.f32.gmra.mxu0 %v96
    %v241 = vpop.f32.mrf.mxu0
    %v242 = vadd.f32 %v50, %v241
    %v243 = vpop.f32.mrf.mxu0
    %244 = vmatprep.mubr.f32.mxu0 0.0
    %245 = vmatmul.mubr.f32.gmra.mxu0 %v99
    %v246 = vpop.f32.mrf.mxu0
    %v247 = vadd.f32 %v50, %v246
    %v248 = vpop.f32.mrf.mxu0
    %249 = vdwg.mxu0
    %v250 = vmax.f32 %v172, 0.0
    %v251 = vmax.f32 %v177, 0.0
    %v252 = vmax.f32 %v182, 0.0
    %v253 = vmax.f32 %v187, 0.0
    %v254 = vmax.f32 %v192, 0.0
    %v255 = vmax.f32 %v197, 0.0
    %v256 = vmax.f32 %v202, 0.0
    %v257 = vmax.f32 %v207, 0.0
    %v258 = vmax.f32 %v212, 0.0
    %v259 = vmax.f32 %v217, 0.0
    %v260 = vmax.f32 %v222, 0.0
    %v261 = vmax.f32 %v227, 0.0
    %v262 = vmax.f32 %v232, 0.0
    %v263 = vmax.f32 %v237, 0.0
    %v264 = vmax.f32 %v242, 0.0
    %v265 = vmax.f32 %v247, 0.0
    %v266 = vld [vmem:[%s3] sm:$0xff]
    %v267 = vld [vmem:[%s3 + $0x8] sm:$0xff]
    %v268 = vld [vmem:[%s3 + $0x10] sm:$0xff]
    %v269 = vld [vmem:[%s3 + $0x18] sm:$0xff]
    %270 = vmatprep.subr.mxu0 0.0
    %271 = vmatpush1.msra.mxu0 %v265
    %272 = vmatprep.subr.mxu0 0.0
    %273 = vmatpush1.msra.mxu0 %v264
    %274 = vmatprep.subr.mxu0 0.0
    %275 = vmatpush1.msra.mxu0 %v263
    %276 = vmatprep.subr.mxu0 0.0
    %277 = vmatpush1.msra.mxu0 %v262
    %278 = vmatprep.subr.mxu0 0.0
    %279 = vmatpush1.msra.mxu0 %v261
    %280 = vmatprep.subr.mxu0 0.0
    %281 = vmatpush1.msra.mxu0 %v260
    %282 = vmatprep.subr.mxu0 0.0
    %283 = vmatpush1.msra.mxu0 %v259
    %284 = vmatprep.subr.mxu0 0.0
    %285 = vmatpush1.msra.mxu0 %v258
    %286 = vmatprep.subr.mxu0 0.0
    %287 = vmatpush1.msra.mxu0 %v257
    %288 = vmatprep.subr.mxu0 0.0
    %289 = vmatpush1.msra.mxu0 %v256
    %290 = vmatprep.subr.mxu0 0.0
    %291 = vmatpush1.msra.mxu0 %v255
    %292 = vmatprep.subr.mxu0 0.0
    %293 = vmatpush1.msra.mxu0 %v254
    %294 = vmatprep.subr.mxu0 0.0
    %295 = vmatpush1.msra.mxu0 %v253
    %296 = vmatprep.subr.mxu0 0.0
    %297 = vmatpush1.msra.mxu0 %v252
    %298 = vmatprep.subr.mxu0 0.0
    %299 = vmatpush1.msra.mxu0 %v251
    %300 = vmatprep.subr.mxu0 0.0
    %301 = vmatpush1.msra.mxu0 %v250
    %302 = vmatprep.subr.mxu0 0.0
    %303 = vmatpush2.msra.mxu0 0.0
    %304 = vmatprep.subr.mxu0 0.0
    %305 = vmatpush2.msra.mxu0 0.0
    %306 = vmatprep.subr.mxu0 0.0
    %307 = vmatpush2.msra.mxu0 0.0
    %308 = vmatprep.subr.mxu0 0.0
    %309 = vmatpush2.msra.mxu0 0.0
    %310 = vmatprep.subr.mxu0 0.0
    %311 = vmatpush2.msra.mxu0 0.0
    %312 = vmatprep.subr.mxu0 0.0
    %313 = vmatpush2.msra.mxu0 0.0
    %314 = vmatprep.subr.mxu0 0.0
    %315 = vmatpush2.msra.mxu0 0.0
    %316 = vmatprep.subr.mxu0 0.0
    %317 = vmatpush2.msra.mxu0 0.0
    %318 = vmatprep.subr.mxu0 0.0
    %319 = vmatpush2.msra.mxu0 0.0
    %320 = vmatprep.subr.mxu0 0.0
    %321 = vmatpush2.msra.mxu0 0.0
    %322 = vmatprep.subr.mxu0 0.0
    %323 = vmatpush2.msra.mxu0 0.0
    %324 = vmatprep.subr.mxu0 0.0
    %325 = vmatpush2.msra.mxu0 0.0
    %326 = vmatprep.subr.mxu0 0.0
    %327 = vmatpush2.msra.mxu0 0.0
    %328 = vmatprep.subr.mxu0 0.0
    %329 = vmatpush2.msra.mxu0 0.0
    %330 = vmatprep.subr.mxu0 0.0
    %331 = vmatpush2.msra.mxu0 0.0
    %332 = vmatprep.subr.mxu0 0.0
    %333 = vmatpush2.msra.mxu0 0.0
    %334 = vmatprep.mubr.f32.mxu0 0.0
    %335 = vmatmul.mubr.f32.gmra.mxu0 %v266
    %v336 = vpop.f32.mrf.mxu0
    %v337 = vadd.f32 0.0, %v336
    %v338 = vpop.f32.mrf.mxu0
    %339 = vmatprep.mubr.f32.mxu0 0.0
    %340 = vmatmul.mubr.f32.gmra.mxu0 %v267
    %v341 = vpop.f32.mrf.mxu0
    %v342 = vadd.f32 0.0, %v341
    %v343 = vpop.f32.mrf.mxu0
    %344 = vmatprep.mubr.f32.mxu0 0.0
    %345 = vmatmul.mubr.f32.gmra.mxu0 %v268
    %v346 = vpop.f32.mrf.mxu0
    %v347 = vadd.f32 0.0, %v346
    %v348 = vpop.f32.mrf.mxu0
    %349 = vmatprep.mubr.f32.mxu0 0.0
    %350 = vmatmul.mubr.f32.gmra.mxu0 %v269
    %v351 = vpop.f32.mrf.mxu0
    %v352 = vadd.f32 0.0, %v351
    %v353 = vpop.f32.mrf.mxu0
    %354 = vdwg.mxu0
    %vm355 = vcmask 130048
    %356 = vst.msk [vmem:[#allocation2] sm:$0xff] %vm355, %v337
    %357 = vst.msk [vmem:[#allocation2 + $0x10] sm:$0xff] %vm355, %v342
    %358 = vst.msk [vmem:[#allocation2 + $0x20] sm:$0xff] %vm355, %v347
    %359 = vst.msk [vmem:[#allocation2 + $0x30] sm:$0xff] %vm355, %v352
    %v360 = vld [vmem:[%s3 + $0x20] sm:$0xff]
    %v361 = vld [vmem:[%s3 + $0x28] sm:$0xff]
    %v362 = vld [vmem:[%s3 + $0x30] sm:$0xff]
    %v363 = vld [vmem:[%s3 + $0x38] sm:$0xff]
    %364 = vmatprep.subr.mxu0 0.0
    %365 = vmatpush1.msra.mxu0 %v265
    %366 = vmatprep.subr.mxu0 0.0
    %367 = vmatpush1.msra.mxu0 %v264
    %368 = vmatprep.subr.mxu0 0.0
    %369 = vmatpush1.msra.mxu0 %v263
    %370 = vmatprep.subr.mxu0 0.0
    %371 = vmatpush1.msra.mxu0 %v262
    %372 = vmatprep.subr.mxu0 0.0
    %373 = vmatpush1.msra.mxu0 %v261
    %374 = vmatprep.subr.mxu0 0.0
    %375 = vmatpush1.msra.mxu0 %v260
    %376 = vmatprep.subr.mxu0 0.0
    %377 = vmatpush1.msra.mxu0 %v259
    %378 = vmatprep.subr.mxu0 0.0
    %379 = vmatpush1.msra.mxu0 %v258
    %380 = vmatprep.subr.mxu0 0.0
    %381 = vmatpush1.msra.mxu0 %v257
    %382 = vmatprep.subr.mxu0 0.0
    %383 = vmatpush1.msra.mxu0 %v256
    %384 = vmatprep.subr.mxu0 0.0
    %385 = vmatpush1.msra.mxu0 %v255
    %386 = vmatprep.subr.mxu0 0.0
    %387 = vmatpush1.msra.mxu0 %v254
    %388 = vmatprep.subr.mxu0 0.0
    %389 = vmatpush1.msra.mxu0 %v253
    %390 = vmatprep.subr.mxu0 0.0
    %391 = vmatpush1.msra.mxu0 %v252
    %392 = vmatprep.subr.mxu0 0.0
    %393 = vmatpush1.msra.mxu0 %v251
    %394 = vmatprep.subr.mxu0 0.0
    %395 = vmatpush1.msra.mxu0 %v250
    %396 = vmatprep.subr.mxu0 0.0
    %397 = vmatpush2.msra.mxu0 0.0
    %398 = vmatprep.subr.mxu0 0.0
    %399 = vmatpush2.msra.mxu0 0.0
    %400 = vmatprep.subr.mxu0 0.0
    %401 = vmatpush2.msra.mxu0 0.0
    %402 = vmatprep.subr.mxu0 0.0
    %403 = vmatpush2.msra.mxu0 0.0
    %404 = vmatprep.subr.mxu0 0.0
    %405 = vmatpush2.msra.mxu0 0.0
    %406 = vmatprep.subr.mxu0 0.0
    %407 = vmatpush2.msra.mxu0 0.0
    %408 = vmatprep.subr.mxu0 0.0
    %409 = vmatpush2.msra.mxu0 0.0
    %410 = vmatprep.subr.mxu0 0.0
    %411 = vmatpush2.msra.mxu0 0.0
    %412 = vmatprep.subr.mxu0 0.0
    %413 = vmatpush2.msra.mxu0 0.0
    %414 = vmatprep.subr.mxu0 0.0
    %415 = vmatpush2.msra.mxu0 0.0
    %416 = vmatprep.subr.mxu0 0.0
    %417 = vmatpush2.msra.mxu0 0.0
    %418 = vmatprep.subr.mxu0 0.0
    %419 = vmatpush2.msra.mxu0 0.0
    %420 = vmatprep.subr.mxu0 0.0
    %421 = vmatpush2.msra.mxu0 0.0
    %422 = vmatprep.subr.mxu0 0.0
    %423 = vmatpush2.msra.mxu0 0.0
    %424 = vmatprep.subr.mxu0 0.0
    %425 = vmatpush2.msra.mxu0 0.0
    %426 = vmatprep.subr.mxu0 0.0
    %427 = vmatpush2.msra.mxu0 0.0
    %428 = vmatprep.mubr.f32.mxu0 0.0
    %429 = vmatmul.mubr.f32.gmra.mxu0 %v360
    %v430 = vpop.f32.mrf.mxu0
    %v431 = vadd.f32 0.0, %v430
    %v432 = vpop.f32.mrf.mxu0
    %433 = vmatprep.mubr.f32.mxu0 0.0
    %434 = vmatmul.mubr.f32.gmra.mxu0 %v361
    %v435 = vpop.f32.mrf.mxu0
    %v436 = vadd.f32 0.0, %v435
    %v437 = vpop.f32.mrf.mxu0
    %438 = vmatprep.mubr.f32.mxu0 0.0
    %439 = vmatmul.mubr.f32.gmra.mxu0 %v362
    %v440 = vpop.f32.mrf.mxu0
    %v441 = vadd.f32 0.0, %v440
    %v442 = vpop.f32.mrf.mxu0
    %443 = vmatprep.mubr.f32.mxu0 0.0
    %444 = vmatmul.mubr.f32.gmra.mxu0 %v363
    %v445 = vpop.f32.mrf.mxu0
    %v446 = vadd.f32 0.0, %v445
    %v447 = vpop.f32.mrf.mxu0
    %448 = vdwg.mxu0
    %453 = vrot.lane.b32.xlu0 %v431, 16
    %v454 = vpop.permute.xlu0 %453
    %455 = vrot.lane.b32.xlu0 %v436, 16
    %v456 = vpop.permute.xlu0 %455
    %457 = vrot.lane.b32.xlu0 %v441, 16
    %v458 = vpop.permute.xlu0 %457
    %459 = vrot.lane.b32.xlu0 %v446, 16
    %v460 = vpop.permute.xlu0 %459
    %vm465 = vcmask 261248
    %466 = vst.msk [vmem:[#allocation2] sm:$0xff] %vm465, %v454
    %467 = vst.msk [vmem:[#allocation2 + $0x10] sm:$0xff] %vm465, %v456
    %468 = vst.msk [vmem:[#allocation2 + $0x20] sm:$0xff] %vm465, %v458
    %469 = vst.msk [vmem:[#allocation2 + $0x30] sm:$0xff] %vm465, %v460
    %v470 = vld [vmem:[%s3 + $0x40] sm:$0xff]
    %v471 = vld [vmem:[%s3 + $0x48] sm:$0xff]
    %v472 = vld [vmem:[%s3 + $0x50] sm:$0xff]
    %v473 = vld [vmem:[%s3 + $0x58] sm:$0xff]
    %474 = vmatprep.subr.mxu0 0.0
    %475 = vmatpush1.msra.mxu0 %v265
    %476 = vmatprep.subr.mxu0 0.0
    %477 = vmatpush1.msra.mxu0 %v264
    %478 = vmatprep.subr.mxu0 0.0
    %479 = vmatpush1.msra.mxu0 %v263
    %480 = vmatprep.subr.mxu0 0.0
    %481 = vmatpush1.msra.mxu0 %v262
    %482 = vmatprep.subr.mxu0 0.0
    %483 = vmatpush1.msra.mxu0 %v261
    %484 = vmatprep.subr.mxu0 0.0
    %485 = vmatpush1.msra.mxu0 %v260
    %486 = vmatprep.subr.mxu0 0.0
    %487 = vmatpush1.msra.mxu0 %v259
    %488 = vmatprep.subr.mxu0 0.0
    %489 = vmatpush1.msra.mxu0 %v258
    %490 = vmatprep.subr.mxu0 0.0
    %491 = vmatpush1.msra.mxu0 %v257
    %492 = vmatprep.subr.mxu0 0.0
    %493 = vmatpush1.msra.mxu0 %v256
    %494 = vmatprep.subr.mxu0 0.0
    %495 = vmatpush1.msra.mxu0 %v255
    %496 = vmatprep.subr.mxu0 0.0
    %497 = vmatpush1.msra.mxu0 %v254
    %498 = vmatprep.subr.mxu0 0.0
    %499 = vmatpush1.msra.mxu0 %v253
    %500 = vmatprep.subr.mxu0 0.0
    %501 = vmatpush1.msra.mxu0 %v252
    %502 = vmatprep.subr.mxu0 0.0
    %503 = vmatpush1.msra.mxu0 %v251
    %504 = vmatprep.subr.mxu0 0.0
    %505 = vmatpush1.msra.mxu0 %v250
    %506 = vmatprep.subr.mxu0 0.0
    %507 = vmatpush2.msra.mxu0 0.0
    %508 = vmatprep.subr.mxu0 0.0
    %509 = vmatpush2.msra.mxu0 0.0
    %510 = vmatprep.subr.mxu0 0.0
    %511 = vmatpush2.msra.mxu0 0.0
    %512 = vmatprep.subr.mxu0 0.0
    %513 = vmatpush2.msra.mxu0 0.0
    %514 = vmatprep.subr.mxu0 0.0
    %515 = vmatpush2.msra.mxu0 0.0
    %516 = vmatprep.subr.mxu0 0.0
    %517 = vmatpush2.msra.mxu0 0.0
    %518 = vmatprep.subr.mxu0 0.0
    %519 = vmatpush2.msra.mxu0 0.0
    %520 = vmatprep.subr.mxu0 0.0
    %521 = vmatpush2.msra.mxu0 0.0
    %522 = vmatprep.subr.mxu0 0.0
    %523 = vmatpush2.msra.mxu0 0.0
    %524 = vmatprep.subr.mxu0 0.0
    %525 = vmatpush2.msra.mxu0 0.0
    %526 = vmatprep.subr.mxu0 0.0
    %527 = vmatpush2.msra.mxu0 0.0
    %528 = vmatprep.subr.mxu0 0.0
    %529 = vmatpush2.msra.mxu0 0.0
    %530 = vmatprep.subr.mxu0 0.0
    %531 = vmatpush2.msra.mxu0 0.0
    %532 = vmatprep.subr.mxu0 0.0
    %533 = vmatpush2.msra.mxu0 0.0
    %534 = vmatprep.subr.mxu0 0.0
    %535 = vmatpush2.msra.mxu0 0.0
    %536 = vmatprep.subr.mxu0 0.0
    %537 = vmatpush2.msra.mxu0 0.0
    %538 = vmatprep.mubr.f32.mxu0 0.0
    %539 = vmatmul.mubr.f32.gmra.mxu0 %v470
    %v540 = vpop.f32.mrf.mxu0
    %v541 = vadd.f32 0.0, %v540
    %v542 = vpop.f32.mrf.mxu0
    %543 = vmatprep.mubr.f32.mxu0 0.0
    %544 = vmatmul.mubr.f32.gmra.mxu0 %v471
    %v545 = vpop.f32.mrf.mxu0
    %v546 = vadd.f32 0.0, %v545
    %v547 = vpop.f32.mrf.mxu0
    %548 = vmatprep.mubr.f32.mxu0 0.0
    %549 = vmatmul.mubr.f32.gmra.mxu0 %v472
    %v550 = vpop.f32.mrf.mxu0
    %v551 = vadd.f32 0.0, %v550
    %v552 = vpop.f32.mrf.mxu0
    %553 = vmatprep.mubr.f32.mxu0 0.0
    %554 = vmatmul.mubr.f32.gmra.mxu0 %v473
    %v555 = vpop.f32.mrf.mxu0
    %v556 = vadd.f32 0.0, %v555
    %v557 = vpop.f32.mrf.mxu0
    %558 = vdwg.mxu0
    %563 = vrot.lane.b32.xlu0 %v541, 32
    %v564 = vpop.permute.xlu0 %563
    %565 = vrot.lane.b32.xlu0 %v546, 32
    %v566 = vpop.permute.xlu0 %565
    %567 = vrot.lane.b32.xlu0 %v551, 32
    %v568 = vpop.permute.xlu0 %567
    %569 = vrot.lane.b32.xlu0 %v556, 32
    %v570 = vpop.permute.xlu0 %569
    %vm575 = vcmask 392448
    %576 = vst.msk [vmem:[#allocation2] sm:$0xff] %vm575, %v564
    %577 = vst.msk [vmem:[#allocation2 + $0x10] sm:$0xff] %vm575, %v566
    %578 = vst.msk [vmem:[#allocation2 + $0x20] sm:$0xff] %vm575, %v568
    %579 = vst.msk [vmem:[#allocation2 + $0x30] sm:$0xff] %vm575, %v570
    %v580 = vld [vmem:[%s3 + $0x60] sm:$0xff]
    %v581 = vld [vmem:[%s3 + $0x68] sm:$0xff]
    %v582 = vld [vmem:[%s3 + $0x70] sm:$0xff]
    %v583 = vld [vmem:[%s3 + $0x78] sm:$0xff]
    %584 = vmatprep.subr.mxu0 0.0
    %585 = vmatpush1.msra.mxu0 %v265
    %586 = vmatprep.subr.mxu0 0.0
    %587 = vmatpush1.msra.mxu0 %v264
    %588 = vmatprep.subr.mxu0 0.0
    %589 = vmatpush1.msra.mxu0 %v263
    %590 = vmatprep.subr.mxu0 0.0
    %591 = vmatpush1.msra.mxu0 %v262
    %592 = vmatprep.subr.mxu0 0.0
    %593 = vmatpush1.msra.mxu0 %v261
    %594 = vmatprep.subr.mxu0 0.0
    %595 = vmatpush1.msra.mxu0 %v260
    %596 = vmatprep.subr.mxu0 0.0
    %597 = vmatpush1.msra.mxu0 %v259
    %598 = vmatprep.subr.mxu0 0.0
    %599 = vmatpush1.msra.mxu0 %v258
    %600 = vmatprep.subr.mxu0 0.0
    %601 = vmatpush1.msra.mxu0 %v257
    %602 = vmatprep.subr.mxu0 0.0
    %603 = vmatpush1.msra.mxu0 %v256
    %604 = vmatprep.subr.mxu0 0.0
    %605 = vmatpush1.msra.mxu0 %v255
    %606 = vmatprep.subr.mxu0 0.0
    %607 = vmatpush1.msra.mxu0 %v254
    %608 = vmatprep.subr.mxu0 0.0
    %609 = vmatpush1.msra.mxu0 %v253
    %610 = vmatprep.subr.mxu0 0.0
    %611 = vmatpush1.msra.mxu0 %v252
    %612 = vmatprep.subr.mxu0 0.0
    %613 = vmatpush1.msra.mxu0 %v251
    %614 = vmatprep.subr.mxu0 0.0
    %615 = vmatpush1.msra.mxu0 %v250
    %616 = vmatprep.subr.mxu0 0.0
    %617 = vmatpush2.msra.mxu0 0.0
    %618 = vmatprep.subr.mxu0 0.0
    %619 = vmatpush2.msra.mxu0 0.0
    %620 = vmatprep.subr.mxu0 0.0
    %621 = vmatpush2.msra.mxu0 0.0
    %622 = vmatprep.subr.mxu0 0.0
    %623 = vmatpush2.msra.mxu0 0.0
    %624 = vmatprep.subr.mxu0 0.0
    %625 = vmatpush2.msra.mxu0 0.0
    %626 = vmatprep.subr.mxu0 0.0
    %627 = vmatpush2.msra.mxu0 0.0
    %628 = vmatprep.subr.mxu0 0.0
    %629 = vmatpush2.msra.mxu0 0.0
    %630 = vmatprep.subr.mxu0 0.0
    %631 = vmatpush2.msra.mxu0 0.0
    %632 = vmatprep.subr.mxu0 0.0
    %633 = vmatpush2.msra.mxu0 0.0
    %634 = vmatprep.subr.mxu0 0.0
    %635 = vmatpush2.msra.mxu0 0.0
    %636 = vmatprep.subr.mxu0 0.0
    %637 = vmatpush2.msra.mxu0 0.0
    %638 = vmatprep.subr.mxu0 0.0
    %639 = vmatpush2.msra.mxu0 0.0
    %640 = vmatprep.subr.mxu0 0.0
    %641 = vmatpush2.msra.mxu0 0.0
    %642 = vmatprep.subr.mxu0 0.0
    %643 = vmatpush2.msra.mxu0 0.0
    %644 = vmatprep.subr.mxu0 0.0
    %645 = vmatpush2.msra.mxu0 0.0
    %646 = vmatprep.subr.mxu0 0.0
    %647 = vmatpush2.msra.mxu0 0.0
    %648 = vmatprep.mubr.f32.mxu0 0.0
    %649 = vmatmul.mubr.f32.gmra.mxu0 %v580
    %v650 = vpop.f32.mrf.mxu0
    %v651 = vadd.f32 0.0, %v650
    %v652 = vpop.f32.mrf.mxu0
    %653 = vmatprep.mubr.f32.mxu0 0.0
    %654 = vmatmul.mubr.f32.gmra.mxu0 %v581
    %v655 = vpop.f32.mrf.mxu0
    %v656 = vadd.f32 0.0, %v655
    %v657 = vpop.f32.mrf.mxu0
    %658 = vmatprep.mubr.f32.mxu0 0.0
    %659 = vmatmul.mubr.f32.gmra.mxu0 %v582
    %v660 = vpop.f32.mrf.mxu0
    %v661 = vadd.f32 0.0, %v660
    %v662 = vpop.f32.mrf.mxu0
    %663 = vmatprep.mubr.f32.mxu0 0.0
    %664 = vmatmul.mubr.f32.gmra.mxu0 %v583
    %v665 = vpop.f32.mrf.mxu0
    %v666 = vadd.f32 0.0, %v665
    %v667 = vpop.f32.mrf.mxu0
    %668 = vdwg.mxu0
    %673 = vrot.lane.b32.xlu0 %v651, 48
    %v674 = vpop.permute.xlu0 %673
    %675 = vrot.lane.b32.xlu0 %v656, 48
    %v676 = vpop.permute.xlu0 %675
    %677 = vrot.lane.b32.xlu0 %v661, 48
    %v678 = vpop.permute.xlu0 %677
    %679 = vrot.lane.b32.xlu0 %v666, 48
    %v680 = vpop.permute.xlu0 %679
    %vm685 = vcmask 523648
    %686 = vst.msk [vmem:[#allocation2] sm:$0xff] %vm685, %v674
    %687 = vst.msk [vmem:[#allocation2 + $0x10] sm:$0xff] %vm685, %v676
    %688 = vst.msk [vmem:[#allocation2 + $0x20] sm:$0xff] %vm685, %v678
    %689 = vst.msk [vmem:[#allocation2 + $0x30] sm:$0xff] %vm685, %v680
    %v690 = vld [vmem:[%s3 + $0x80] sm:$0xff]
    %v691 = vld [vmem:[%s3 + $0x88] sm:$0xff]
    %v692 = vld [vmem:[%s3 + $0x90] sm:$0xff]
    %v693 = vld [vmem:[%s3 + $0x98] sm:$0xff]
    %694 = vmatprep.subr.mxu0 0.0
    %695 = vmatpush1.msra.mxu0 %v265
    %696 = vmatprep.subr.mxu0 0.0
    %697 = vmatpush1.msra.mxu0 %v264
    %698 = vmatprep.subr.mxu0 0.0
    %699 = vmatpush1.msra.mxu0 %v263
    %700 = vmatprep.subr.mxu0 0.0
    %701 = vmatpush1.msra.mxu0 %v262
    %702 = vmatprep.subr.mxu0 0.0
    %703 = vmatpush1.msra.mxu0 %v261
    %704 = vmatprep.subr.mxu0 0.0
    %705 = vmatpush1.msra.mxu0 %v260
    %706 = vmatprep.subr.mxu0 0.0
    %707 = vmatpush1.msra.mxu0 %v259
    %708 = vmatprep.subr.mxu0 0.0
    %709 = vmatpush1.msra.mxu0 %v258
    %710 = vmatprep.subr.mxu0 0.0
    %711 = vmatpush1.msra.mxu0 %v257
    %712 = vmatprep.subr.mxu0 0.0
    %713 = vmatpush1.msra.mxu0 %v256
    %714 = vmatprep.subr.mxu0 0.0
    %715 = vmatpush1.msra.mxu0 %v255
    %716 = vmatprep.subr.mxu0 0.0
    %717 = vmatpush1.msra.mxu0 %v254
    %718 = vmatprep.subr.mxu0 0.0
    %719 = vmatpush1.msra.mxu0 %v253
    %720 = vmatprep.subr.mxu0 0.0
    %721 = vmatpush1.msra.mxu0 %v252
    %722 = vmatprep.subr.mxu0 0.0
    %723 = vmatpush1.msra.mxu0 %v251
    %724 = vmatprep.subr.mxu0 0.0
    %725 = vmatpush1.msra.mxu0 %v250
    %726 = vmatprep.subr.mxu0 0.0
    %727 = vmatpush2.msra.mxu0 0.0
    %728 = vmatprep.subr.mxu0 0.0
    %729 = vmatpush2.msra.mxu0 0.0
    %730 = vmatprep.subr.mxu0 0.0
    %731 = vmatpush2.msra.mxu0 0.0
    %732 = vmatprep.subr.mxu0 0.0
    %733 = vmatpush2.msra.mxu0 0.0
    %734 = vmatprep.subr.mxu0 0.0
    %735 = vmatpush2.msra.mxu0 0.0
    %736 = vmatprep.subr.mxu0 0.0
    %737 = vmatpush2.msra.mxu0 0.0
    %738 = vmatprep.subr.mxu0 0.0
    %739 = vmatpush2.msra.mxu0 0.0
    %740 = vmatprep.subr.mxu0 0.0
    %741 = vmatpush2.msra.mxu0 0.0
    %742 = vmatprep.subr.mxu0 0.0
    %743 = vmatpush2.msra.mxu0 0.0
    %744 = vmatprep.subr.mxu0 0.0
    %745 = vmatpush2.msra.mxu0 0.0
    %746 = vmatprep.subr.mxu0 0.0
    %747 = vmatpush2.msra.mxu0 0.0
    %748 = vmatprep.subr.mxu0 0.0
    %749 = vmatpush2.msra.mxu0 0.0
    %750 = vmatprep.subr.mxu0 0.0
    %751 = vmatpush2.msra.mxu0 0.0
    %752 = vmatprep.subr.mxu0 0.0
    %753 = vmatpush2.msra.mxu0 0.0
    %754 = vmatprep.subr.mxu0 0.0
    %755 = vmatpush2.msra.mxu0 0.0
    %756 = vmatprep.subr.mxu0 0.0
    %757 = vmatpush2.msra.mxu0 0.0
    %758 = vmatprep.mubr.f32.mxu0 0.0
    %759 = vmatmul.mubr.f32.gmra.mxu0 %v690
    %v760 = vpop.f32.mrf.mxu0
    %v761 = vadd.f32 0.0, %v760
    %v762 = vpop.f32.mrf.mxu0
    %763 = vmatprep.mubr.f32.mxu0 0.0
    %764 = vmatmul.mubr.f32.gmra.mxu0 %v691
    %v765 = vpop.f32.mrf.mxu0
    %v766 = vadd.f32 0.0, %v765
    %v767 = vpop.f32.mrf.mxu0
    %768 = vmatprep.mubr.f32.mxu0 0.0
    %769 = vmatmul.mubr.f32.gmra.mxu0 %v692
    %v770 = vpop.f32.mrf.mxu0
    %v771 = vadd.f32 0.0, %v770
    %v772 = vpop.f32.mrf.mxu0
    %773 = vmatprep.mubr.f32.mxu0 0.0
    %774 = vmatmul.mubr.f32.gmra.mxu0 %v693
    %v775 = vpop.f32.mrf.mxu0
    %v776 = vadd.f32 0.0, %v775
    %v777 = vpop.f32.mrf.mxu0
    %778 = vdwg.mxu0
    %783 = vrot.lane.b32.xlu0 %v761, 64
    %v784 = vpop.permute.xlu0 %783
    %785 = vrot.lane.b32.xlu0 %v766, 64
    %v786 = vpop.permute.xlu0 %785
    %787 = vrot.lane.b32.xlu0 %v771, 64
    %v788 = vpop.permute.xlu0 %787
    %789 = vrot.lane.b32.xlu0 %v776, 64
    %v790 = vpop.permute.xlu0 %789
    %vm795 = vcmask 654848
    %796 = vst.msk [vmem:[#allocation2] sm:$0xff] %vm795, %v784
    %797 = vst.msk [vmem:[#allocation2 + $0x10] sm:$0xff] %vm795, %v786
    %798 = vst.msk [vmem:[#allocation2 + $0x20] sm:$0xff] %vm795, %v788
    %799 = vst.msk [vmem:[#allocation2 + $0x30] sm:$0xff] %vm795, %v790
    %v800 = vld [vmem:[%s3 + $0xa0] sm:$0xff]
    %v801 = vld [vmem:[%s3 + $0xa8] sm:$0xff]
    %v802 = vld [vmem:[%s3 + $0xb0] sm:$0xff]
    %v803 = vld [vmem:[%s3 + $0xb8] sm:$0xff]
    %804 = vmatprep.subr.mxu0 0.0
    %805 = vmatpush1.msra.mxu0 %v265
    %806 = vmatprep.subr.mxu0 0.0
    %807 = vmatpush1.msra.mxu0 %v264
    %808 = vmatprep.subr.mxu0 0.0
    %809 = vmatpush1.msra.mxu0 %v263
    %810 = vmatprep.subr.mxu0 0.0
    %811 = vmatpush1.msra.mxu0 %v262
    %812 = vmatprep.subr.mxu0 0.0
    %813 = vmatpush1.msra.mxu0 %v261
    %814 = vmatprep.subr.mxu0 0.0
    %815 = vmatpush1.msra.mxu0 %v260
    %816 = vmatprep.subr.mxu0 0.0
    %817 = vmatpush1.msra.mxu0 %v259
    %818 = vmatprep.subr.mxu0 0.0
    %819 = vmatpush1.msra.mxu0 %v258
    %820 = vmatprep.subr.mxu0 0.0
    %821 = vmatpush1.msra.mxu0 %v257
    %822 = vmatprep.subr.mxu0 0.0
    %823 = vmatpush1.msra.mxu0 %v256
    %824 = vmatprep.subr.mxu0 0.0
    %825 = vmatpush1.msra.mxu0 %v255
    %826 = vmatprep.subr.mxu0 0.0
    %827 = vmatpush1.msra.mxu0 %v254
    %828 = vmatprep.subr.mxu0 0.0
    %829 = vmatpush1.msra.mxu0 %v253
    %830 = vmatprep.subr.mxu0 0.0
    %831 = vmatpush1.msra.mxu0 %v252
    %832 = vmatprep.subr.mxu0 0.0
    %833 = vmatpush1.msra.mxu0 %v251
    %834 = vmatprep.subr.mxu0 0.0
    %835 = vmatpush1.msra.mxu0 %v250
    %836 = vmatprep.subr.mxu0 0.0
    %837 = vmatpush2.msra.mxu0 0.0
    %838 = vmatprep.subr.mxu0 0.0
    %839 = vmatpush2.msra.mxu0 0.0
    %840 = vmatprep.subr.mxu0 0.0
    %841 = vmatpush2.msra.mxu0 0.0
    %842 = vmatprep.subr.mxu0 0.0
    %843 = vmatpush2.msra.mxu0 0.0
    %844 = vmatprep.subr.mxu0 0.0
    %845 = vmatpush2.msra.mxu0 0.0
    %846 = vmatprep.subr.mxu0 0.0
    %847 = vmatpush2.msra.mxu0 0.0
    %848 = vmatprep.subr.mxu0 0.0
    %849 = vmatpush2.msra.mxu0 0.0
    %850 = vmatprep.subr.mxu0 0.0
    %851 = vmatpush2.msra.mxu0 0.0
    %852 = vmatprep.subr.mxu0 0.0
    %853 = vmatpush2.msra.mxu0 0.0
    %854 = vmatprep.subr.mxu0 0.0
    %855 = vmatpush2.msra.mxu0 0.0
    %856 = vmatprep.subr.mxu0 0.0
    %857 = vmatpush2.msra.mxu0 0.0
    %858 = vmatprep.subr.mxu0 0.0
    %859 = vmatpush2.msra.mxu0 0.0
    %860 = vmatprep.subr.mxu0 0.0
    %861 = vmatpush2.msra.mxu0 0.0
    %862 = vmatprep.subr.mxu0 0.0
    %863 = vmatpush2.msra.mxu0 0.0
    %864 = vmatprep.subr.mxu0 0.0
    %865 = vmatpush2.msra.mxu0 0.0
    %866 = vmatprep.subr.mxu0 0.0
    %867 = vmatpush2.msra.mxu0 0.0
    %868 = vmatprep.mubr.f32.mxu0 0.0
    %869 = vmatmul.mubr.f32.gmra.mxu0 %v800
    %v870 = vpop.f32.mrf.mxu0
    %v871 = vadd.f32 0.0, %v870
    %v872 = vpop.f32.mrf.mxu0
    %873 = vmatprep.mubr.f32.mxu0 0.0
    %874 = vmatmul.mubr.f32.gmra.mxu0 %v801
    %v875 = vpop.f32.mrf.mxu0
    %v876 = vadd.f32 0.0, %v875
    %v877 = vpop.f32.mrf.mxu0
    %878 = vmatprep.mubr.f32.mxu0 0.0
    %879 = vmatmul.mubr.f32.gmra.mxu0 %v802
    %v880 = vpop.f32.mrf.mxu0
    %v881 = vadd.f32 0.0, %v880
    %v882 = vpop.f32.mrf.mxu0
    %883 = vmatprep.mubr.f32.mxu0 0.0
    %884 = vmatmul.mubr.f32.gmra.mxu0 %v803
    %v885 = vpop.f32.mrf.mxu0
    %v886 = vadd.f32 0.0, %v885
    %v887 = vpop.f32.mrf.mxu0
    %888 = vdwg.mxu0
    %893 = vrot.lane.b32.xlu0 %v871, 80
    %v894 = vpop.permute.xlu0 %893
    %895 = vrot.lane.b32.xlu0 %v876, 80
    %v896 = vpop.permute.xlu0 %895
    %897 = vrot.lane.b32.xlu0 %v881, 80
    %v898 = vpop.permute.xlu0 %897
    %899 = vrot.lane.b32.xlu0 %v886, 80
    %v900 = vpop.permute.xlu0 %899
    %vm905 = vcmask 786048
    %906 = vst.msk [vmem:[#allocation2] sm:$0xff] %vm905, %v894
    %907 = vst.msk [vmem:[#allocation2 + $0x10] sm:$0xff] %vm905, %v896
    %908 = vst.msk [vmem:[#allocation2 + $0x20] sm:$0xff] %vm905, %v898
    %909 = vst.msk [vmem:[#allocation2 + $0x30] sm:$0xff] %vm905, %v900
    %v910 = vld [vmem:[%s3 + $0xc0] sm:$0xff]
    %v911 = vld [vmem:[%s3 + $0xc8] sm:$0xff]
    %v912 = vld [vmem:[%s3 + $0xd0] sm:$0xff]
    %v913 = vld [vmem:[%s3 + $0xd8] sm:$0xff]
    %914 = vmatprep.subr.mxu0 0.0
    %915 = vmatpush1.msra.mxu0 %v265
    %916 = vmatprep.subr.mxu0 0.0
    %917 = vmatpush1.msra.mxu0 %v264
    %918 = vmatprep.subr.mxu0 0.0
    %919 = vmatpush1.msra.mxu0 %v263
    %920 = vmatprep.subr.mxu0 0.0
    %921 = vmatpush1.msra.mxu0 %v262
    %922 = vmatprep.subr.mxu0 0.0
    %923 = vmatpush1.msra.mxu0 %v261
    %924 = vmatprep.subr.mxu0 0.0
    %925 = vmatpush1.msra.mxu0 %v260
    %926 = vmatprep.subr.mxu0 0.0
    %927 = vmatpush1.msra.mxu0 %v259
    %928 = vmatprep.subr.mxu0 0.0
    %929 = vmatpush1.msra.mxu0 %v258
    %930 = vmatprep.subr.mxu0 0.0
    %931 = vmatpush1.msra.mxu0 %v257
    %932 = vmatprep.subr.mxu0 0.0
    %933 = vmatpush1.msra.mxu0 %v256
    %934 = vmatprep.subr.mxu0 0.0
    %935 = vmatpush1.msra.mxu0 %v255
    %936 = vmatprep.subr.mxu0 0.0
    %937 = vmatpush1.msra.mxu0 %v254
    %938 = vmatprep.subr.mxu0 0.0
    %939 = vmatpush1.msra.mxu0 %v253
    %940 = vmatprep.subr.mxu0 0.0
    %941 = vmatpush1.msra.mxu0 %v252
    %942 = vmatprep.subr.mxu0 0.0
    %943 = vmatpush1.msra.mxu0 %v251
    %944 = vmatprep.subr.mxu0 0.0
    %945 = vmatpush1.msra.mxu0 %v250
    %946 = vmatprep.subr.mxu0 0.0
    %947 = vmatpush2.msra.mxu0 0.0
    %948 = vmatprep.subr.mxu0 0.0
    %949 = vmatpush2.msra.mxu0 0.0
    %950 = vmatprep.subr.mxu0 0.0
    %951 = vmatpush2.msra.mxu0 0.0
    %952 = vmatprep.subr.mxu0 0.0
    %953 = vmatpush2.msra.mxu0 0.0
    %954 = vmatprep.subr.mxu0 0.0
    %955 = vmatpush2.msra.mxu0 0.0
    %956 = vmatprep.subr.mxu0 0.0
    %957 = vmatpush2.msra.mxu0 0.0
    %958 = vmatprep.subr.mxu0 0.0
    %959 = vmatpush2.msra.mxu0 0.0
    %960 = vmatprep.subr.mxu0 0.0
    %961 = vmatpush2.msra.mxu0 0.0
    %962 = vmatprep.subr.mxu0 0.0
    %963 = vmatpush2.msra.mxu0 0.0
    %964 = vmatprep.subr.mxu0 0.0
    %965 = vmatpush2.msra.mxu0 0.0
    %966 = vmatprep.subr.mxu0 0.0
    %967 = vmatpush2.msra.mxu0 0.0
    %968 = vmatprep.subr.mxu0 0.0
    %969 = vmatpush2.msra.mxu0 0.0
    %970 = vmatprep.subr.mxu0 0.0
    %971 = vmatpush2.msra.mxu0 0.0
    %972 = vmatprep.subr.mxu0 0.0
    %973 = vmatpush2.msra.mxu0 0.0
    %974 = vmatprep.subr.mxu0 0.0
    %975 = vmatpush2.msra.mxu0 0.0
    %976 = vmatprep.subr.mxu0 0.0
    %977 = vmatpush2.msra.mxu0 0.0
    %978 = vmatprep.mubr.f32.mxu0 0.0
    %979 = vmatmul.mubr.f32.gmra.mxu0 %v910
    %v980 = vpop.f32.mrf.mxu0
    %v981 = vadd.f32 0.0, %v980
    %v982 = vpop.f32.mrf.mxu0
    %983 = vmatprep.mubr.f32.mxu0 0.0
    %984 = vmatmul.mubr.f32.gmra.mxu0 %v911
    %v985 = vpop.f32.mrf.mxu0
    %v986 = vadd.f32 0.0, %v985
    %v987 = vpop.f32.mrf.mxu0
    %988 = vmatprep.mubr.f32.mxu0 0.0
    %989 = vmatmul.mubr.f32.gmra.mxu0 %v912
    %v990 = vpop.f32.mrf.mxu0
    %v991 = vadd.f32 0.0, %v990
    %v992 = vpop.f32.mrf.mxu0
    %993 = vmatprep.mubr.f32.mxu0 0.0
    %994 = vmatmul.mubr.f32.gmra.mxu0 %v913
    %v995 = vpop.f32.mrf.mxu0
    %v996 = vadd.f32 0.0, %v995
    %v997 = vpop.f32.mrf.mxu0
    %998 = vdwg.mxu0
    %1003 = vrot.lane.b32.xlu0 %v981, 96
    %v1004 = vpop.permute.xlu0 %1003
    %1005 = vrot.lane.b32.xlu0 %v986, 96
    %v1006 = vpop.permute.xlu0 %1005
    %1007 = vrot.lane.b32.xlu0 %v991, 96
    %v1008 = vpop.permute.xlu0 %1007
    %1009 = vrot.lane.b32.xlu0 %v996, 96
    %v1010 = vpop.permute.xlu0 %1009
    %vm1015 = vcmask 917248
    %1016 = vst.msk [vmem:[#allocation2] sm:$0xff] %vm1015, %v1004
    %1017 = vst.msk [vmem:[#allocation2 + $0x10] sm:$0xff] %vm1015, %v1006
    %1018 = vst.msk [vmem:[#allocation2 + $0x20] sm:$0xff] %vm1015, %v1008
    %1019 = vst.msk [vmem:[#allocation2 + $0x30] sm:$0xff] %vm1015, %v1010
    %v1020 = vld [vmem:[%s3 + $0xe0] sm:$0xff]
    %v1021 = vld [vmem:[%s3 + $0xe8] sm:$0xff]
    %v1022 = vld [vmem:[%s3 + $0xf0] sm:$0xff]
    %v1023 = vld [vmem:[%s3 + $0xf8] sm:$0xff]
    %1024 = vmatprep.subr.mxu0 0.0
    %1025 = vmatpush1.msra.mxu0 %v265
    %1026 = vmatprep.subr.mxu0 0.0
    %1027 = vmatpush1.msra.mxu0 %v264
    %1028 = vmatprep.subr.mxu0 0.0
    %1029 = vmatpush1.msra.mxu0 %v263
    %1030 = vmatprep.subr.mxu0 0.0
    %1031 = vmatpush1.msra.mxu0 %v262
    %1032 = vmatprep.subr.mxu0 0.0
    %1033 = vmatpush1.msra.mxu0 %v261
    %1034 = vmatprep.subr.mxu0 0.0
    %1035 = vmatpush1.msra.mxu0 %v260
    %1036 = vmatprep.subr.mxu0 0.0
    %1037 = vmatpush1.msra.mxu0 %v259
    %1038 = vmatprep.subr.mxu0 0.0
    %1039 = vmatpush1.msra.mxu0 %v258
    %1040 = vmatprep.subr.mxu0 0.0
    %1041 = vmatpush1.msra.mxu0 %v257
    %1042 = vmatprep.subr.mxu0 0.0
    %1043 = vmatpush1.msra.mxu0 %v256
    %1044 = vmatprep.subr.mxu0 0.0
    %1045 = vmatpush1.msra.mxu0 %v255
    %1046 = vmatprep.subr.mxu0 0.0
    %1047 = vmatpush1.msra.mxu0 %v254
    %1048 = vmatprep.subr.mxu0 0.0
    %1049 = vmatpush1.msra.mxu0 %v253
    %1050 = vmatprep.subr.mxu0 0.0
    %1051 = vmatpush1.msra.mxu0 %v252
    %1052 = vmatprep.subr.mxu0 0.0
    %1053 = vmatpush1.msra.mxu0 %v251
    %1054 = vmatprep.subr.mxu0 0.0
    %1055 = vmatpush1.msra.mxu0 %v250
    %1056 = vmatprep.subr.mxu0 0.0
    %1057 = vmatpush2.msra.mxu0 0.0
    %1058 = vmatprep.subr.mxu0 0.0
    %1059 = vmatpush2.msra.mxu0 0.0
    %1060 = vmatprep.subr.mxu0 0.0
    %1061 = vmatpush2.msra.mxu0 0.0
    %1062 = vmatprep.subr.mxu0 0.0
    %1063 = vmatpush2.msra.mxu0 0.0
    %1064 = vmatprep.subr.mxu0 0.0
    %1065 = vmatpush2.msra.mxu0 0.0
    %1066 = vmatprep.subr.mxu0 0.0
    %1067 = vmatpush2.msra.mxu0 0.0
    %1068 = vmatprep.subr.mxu0 0.0
    %1069 = vmatpush2.msra.mxu0 0.0
    %1070 = vmatprep.subr.mxu0 0.0
    %1071 = vmatpush2.msra.mxu0 0.0
    %1072 = vmatprep.subr.mxu0 0.0
    %1073 = vmatpush2.msra.mxu0 0.0
    %1074 = vmatprep.subr.mxu0 0.0
    %1075 = vmatpush2.msra.mxu0 0.0
    %1076 = vmatprep.subr.mxu0 0.0
    %1077 = vmatpush2.msra.mxu0 0.0
    %1078 = vmatprep.subr.mxu0 0.0
    %1079 = vmatpush2.msra.mxu0 0.0
    %1080 = vmatprep.subr.mxu0 0.0
    %1081 = vmatpush2.msra.mxu0 0.0
    %1082 = vmatprep.subr.mxu0 0.0
    %1083 = vmatpush2.msra.mxu0 0.0
    %1084 = vmatprep.subr.mxu0 0.0
    %1085 = vmatpush2.msra.mxu0 0.0
    %1086 = vmatprep.subr.mxu0 0.0
    %1087 = vmatpush2.msra.mxu0 0.0
    %1088 = vmatprep.mubr.f32.mxu0 0.0
    %1089 = vmatmul.mubr.f32.gmra.mxu0 %v1020
    %v1090 = vpop.f32.mrf.mxu0
    %v1091 = vadd.f32 0.0, %v1090
    %v1092 = vpop.f32.mrf.mxu0
    %1093 = vmatprep.mubr.f32.mxu0 0.0
    %1094 = vmatmul.mubr.f32.gmra.mxu0 %v1021
    %v1095 = vpop.f32.mrf.mxu0
    %v1096 = vadd.f32 0.0, %v1095
    %v1097 = vpop.f32.mrf.mxu0
    %1098 = vmatprep.mubr.f32.mxu0 0.0
    %1099 = vmatmul.mubr.f32.gmra.mxu0 %v1022
    %v1100 = vpop.f32.mrf.mxu0
    %v1101 = vadd.f32 0.0, %v1100
    %v1102 = vpop.f32.mrf.mxu0
    %1103 = vmatprep.mubr.f32.mxu0 0.0
    %1104 = vmatmul.mubr.f32.gmra.mxu0 %v1023
    %v1105 = vpop.f32.mrf.mxu0
    %v1106 = vadd.f32 0.0, %v1105
    %v1107 = vpop.f32.mrf.mxu0
    %1108 = vdwg.mxu0
    %1113 = vrot.lane.b32.xlu0 %v1091, 112
    %v1114 = vpop.permute.xlu0 %1113
    %1115 = vrot.lane.b32.xlu0 %v1096, 112
    %v1116 = vpop.permute.xlu0 %1115
    %1117 = vrot.lane.b32.xlu0 %v1101, 112
    %v1118 = vpop.permute.xlu0 %1117
    %1119 = vrot.lane.b32.xlu0 %v1106, 112
    %v1120 = vpop.permute.xlu0 %1119
    %vm1125 = vcmask 1048448
    %1126 = vst.msk [vmem:[#allocation2] sm:$0xff] %vm1125, %v1114
    %1127 = vst.msk [vmem:[#allocation2 + $0x10] sm:$0xff] %vm1125, %v1116
    %1128 = vst.msk [vmem:[#allocation2 + $0x20] sm:$0xff] %vm1125, %v1118
    %1129 = vst.msk [vmem:[#allocation2 + $0x30] sm:$0xff] %vm1125, %v1120
    %v1130 = vld [vmem:[%s3 + $0x100] sm:$0xff]
    %v1131 = vld [vmem:[%s3 + $0x108] sm:$0xff]
    %v1132 = vld [vmem:[%s3 + $0x110] sm:$0xff]
    %v1133 = vld [vmem:[%s3 + $0x118] sm:$0xff]
    %1134 = vmatprep.subr.mxu0 0.0
    %1135 = vmatpush1.msra.mxu0 %v265
    %1136 = vmatprep.subr.mxu0 0.0
    %1137 = vmatpush1.msra.mxu0 %v264
    %1138 = vmatprep.subr.mxu0 0.0
    %1139 = vmatpush1.msra.mxu0 %v263
    %1140 = vmatprep.subr.mxu0 0.0
    %1141 = vmatpush1.msra.mxu0 %v262
    %1142 = vmatprep.subr.mxu0 0.0
    %1143 = vmatpush1.msra.mxu0 %v261
    %1144 = vmatprep.subr.mxu0 0.0
    %1145 = vmatpush1.msra.mxu0 %v260
    %1146 = vmatprep.subr.mxu0 0.0
    %1147 = vmatpush1.msra.mxu0 %v259
    %1148 = vmatprep.subr.mxu0 0.0
    %1149 = vmatpush1.msra.mxu0 %v258
    %1150 = vmatprep.subr.mxu0 0.0
    %1151 = vmatpush1.msra.mxu0 %v257
    %1152 = vmatprep.subr.mxu0 0.0
    %1153 = vmatpush1.msra.mxu0 %v256
    %1154 = vmatprep.subr.mxu0 0.0
    %1155 = vmatpush1.msra.mxu0 %v255
    %1156 = vmatprep.subr.mxu0 0.0
    %1157 = vmatpush1.msra.mxu0 %v254
    %1158 = vmatprep.subr.mxu0 0.0
    %1159 = vmatpush1.msra.mxu0 %v253
    %1160 = vmatprep.subr.mxu0 0.0
    %1161 = vmatpush1.msra.mxu0 %v252
    %1162 = vmatprep.subr.mxu0 0.0
    %1163 = vmatpush1.msra.mxu0 %v251
    %1164 = vmatprep.subr.mxu0 0.0
    %1165 = vmatpush1.msra.mxu0 %v250
    %1166 = vmatprep.subr.mxu0 0.0
    %1167 = vmatpush2.msra.mxu0 0.0
    %1168 = vmatprep.subr.mxu0 0.0
    %1169 = vmatpush2.msra.mxu0 0.0
    %1170 = vmatprep.subr.mxu0 0.0
    %1171 = vmatpush2.msra.mxu0 0.0
    %1172 = vmatprep.subr.mxu0 0.0
    %1173 = vmatpush2.msra.mxu0 0.0
    %1174 = vmatprep.subr.mxu0 0.0
    %1175 = vmatpush2.msra.mxu0 0.0
    %1176 = vmatprep.subr.mxu0 0.0
    %1177 = vmatpush2.msra.mxu0 0.0
    %1178 = vmatprep.subr.mxu0 0.0
    %1179 = vmatpush2.msra.mxu0 0.0
    %1180 = vmatprep.subr.mxu0 0.0
    %1181 = vmatpush2.msra.mxu0 0.0
    %1182 = vmatprep.subr.mxu0 0.0
    %1183 = vmatpush2.msra.mxu0 0.0
    %1184 = vmatprep.subr.mxu0 0.0
    %1185 = vmatpush2.msra.mxu0 0.0
    %1186 = vmatprep.subr.mxu0 0.0
    %1187 = vmatpush2.msra.mxu0 0.0
    %1188 = vmatprep.subr.mxu0 0.0
    %1189 = vmatpush2.msra.mxu0 0.0
    %1190 = vmatprep.subr.mxu0 0.0
    %1191 = vmatpush2.msra.mxu0 0.0
    %1192 = vmatprep.subr.mxu0 0.0
    %1193 = vmatpush2.msra.mxu0 0.0
    %1194 = vmatprep.subr.mxu0 0.0
    %1195 = vmatpush2.msra.mxu0 0.0
    %1196 = vmatprep.subr.mxu0 0.0
    %1197 = vmatpush2.msra.mxu0 0.0
    %1198 = vmatprep.mubr.f32.mxu0 0.0
    %1199 = vmatmul.mubr.f32.gmra.mxu0 %v1130
    %v1200 = vpop.f32.mrf.mxu0
    %v1201 = vadd.f32 0.0, %v1200
    %v1202 = vpop.f32.mrf.mxu0
    %1203 = vmatprep.mubr.f32.mxu0 0.0
    %1204 = vmatmul.mubr.f32.gmra.mxu0 %v1131
    %v1205 = vpop.f32.mrf.mxu0
    %v1206 = vadd.f32 0.0, %v1205
    %v1207 = vpop.f32.mrf.mxu0
    %1208 = vmatprep.mubr.f32.mxu0 0.0
    %1209 = vmatmul.mubr.f32.gmra.mxu0 %v1132
    %v1210 = vpop.f32.mrf.mxu0
    %v1211 = vadd.f32 0.0, %v1210
    %v1212 = vpop.f32.mrf.mxu0
    %1213 = vmatprep.mubr.f32.mxu0 0.0
    %1214 = vmatmul.mubr.f32.gmra.mxu0 %v1133
    %v1215 = vpop.f32.mrf.mxu0
    %v1216 = vadd.f32 0.0, %v1215
    %v1217 = vpop.f32.mrf.mxu0
    %1218 = vdwg.mxu0
    %1219 = vst.msk [vmem:[#allocation2 + $0x8] sm:$0xff] %vm355, %v1201
    %1220 = vst.msk [vmem:[#allocation2 + $0x18] sm:$0xff] %vm355, %v1206
    %1221 = vst.msk [vmem:[#allocation2 + $0x28] sm:$0xff] %vm355, %v1211
    %1222 = vst.msk [vmem:[#allocation2 + $0x38] sm:$0xff] %vm355, %v1216
    %v1223 = vld [vmem:[#allocation2] sm:$0xff]
    %v1224 = vld [vmem:[#allocation2 + $0x8] sm:$0xff]
    %v1225 = vld [vmem:[#allocation2 + $0x10] sm:$0xff]
    %v1226 = vld [vmem:[#allocation2 + $0x18] sm:$0xff]
    %v1227 = vld [vmem:[#allocation2 + $0x20] sm:$0xff]
    %v1228 = vld [vmem:[#allocation2 + $0x28] sm:$0xff]
    %v1229 = vld [vmem:[#allocation2 + $0x30] sm:$0xff]
    %v1230 = vld [vmem:[#allocation2 + $0x38] sm:$0xff]
    %v1231 = vld [vmem:[%s4] sm:$0xff]
    %v1232 = vld [vmem:[%s4 + $0x8] sm:$0xff]
    %v1233 = vld [vmem:[%s4 + $0x10] sm:$0xff]
    %v1234 = vld [vmem:[%s4 + $0x18] sm:$0xff]
    %v1235 = vld [vmem:[%s4 + $0x20] sm:$0xff]
    %v1236 = vld [vmem:[%s4 + $0x28] sm:$0xff]
    %v1237 = vld [vmem:[%s4 + $0x30] sm:$0xff]
    %v1238 = vld [vmem:[%s4 + $0x38] sm:$0xff]
    %v1239 = vld [vmem:[%s4 + $0x40] sm:$0xff]
    %v1240 = vld [vmem:[%s4 + $0x48] sm:$0xff]
    %v1241 = vld [vmem:[%s4 + $0x50] sm:$0xff]
    %v1242 = vld [vmem:[%s4 + $0x58] sm:$0xff]
    %v1243 = vld [vmem:[%s4 + $0x60] sm:$0xff]
    %v1244 = vld [vmem:[%s4 + $0x68] sm:$0xff]
    %v1245 = vld [vmem:[%s4 + $0x70] sm:$0xff]
    %v1246 = vld [vmem:[%s4 + $0x78] sm:$0xff]
    %v1247 = vld [vmem:[%s4 + $0x80] sm:$0xff]
    %v1248 = vld [vmem:[%s4 + $0x88] sm:$0xff]
    %v1249 = vld [vmem:[%s5] sm:$0x1]
    %v1251 = vlaneseq
    %v1252 = vshrl.u32 %v1251, 7
    %v1253 = vsub.s32 0, %v1252
    %v1254 = vrot.slane %v1249, %v1253
    %v1257 = vsel %vm355, %v1224, 0
    %v1260 = vsel %vm355, %v1226, 0
    %v1263 = vsel %vm355, %v1228, 0
    %v1266 = vsel %vm355, %v1230, 0
    %1268 = vmatprep.subr.mxu0 0.0
    %1269 = vmatpush1.msra.mxu0 %v1246
    %1270 = vmatprep.subr.mxu0 0.0
    %1271 = vmatpush1.msra.mxu0 %v1245
    %1272 = vmatprep.subr.mxu0 0.0
    %1273 = vmatpush1.msra.mxu0 %v1244
    %1274 = vmatprep.subr.mxu0 0.0
    %1275 = vmatpush1.msra.mxu0 %v1243
    %1276 = vmatprep.subr.mxu0 0.0
    %1277 = vmatpush1.msra.mxu0 %v1242
    %1278 = vmatprep.subr.mxu0 0.0
    %1279 = vmatpush1.msra.mxu0 %v1241
    %1280 = vmatprep.subr.mxu0 0.0
    %1281 = vmatpush1.msra.mxu0 %v1240
    %1282 = vmatprep.subr.mxu0 0.0
    %1283 = vmatpush1.msra.mxu0 %v1239
    %1284 = vmatprep.subr.mxu0 0.0
    %1285 = vmatpush1.msra.mxu0 %v1238
    %1286 = vmatprep.subr.mxu0 0.0
    %1287 = vmatpush1.msra.mxu0 %v1237
    %1288 = vmatprep.subr.mxu0 0.0
    %1289 = vmatpush1.msra.mxu0 %v1236
    %1290 = vmatprep.subr.mxu0 0.0
    %1291 = vmatpush1.msra.mxu0 %v1235
    %1292 = vmatprep.subr.mxu0 0.0
    %1293 = vmatpush1.msra.mxu0 %v1234
    %1294 = vmatprep.subr.mxu0 0.0
    %1295 = vmatpush1.msra.mxu0 %v1233
    %1296 = vmatprep.subr.mxu0 0.0
    %1297 = vmatpush1.msra.mxu0 %v1232
    %1298 = vmatprep.subr.mxu0 0.0
    %1299 = vmatpush1.msra.mxu0 %v1231
    %1300 = vmatprep.subr.mxu0 0.0
    %1301 = vmatpush2.msra.mxu0 0.0
    %1302 = vmatprep.subr.mxu0 0.0
    %1303 = vmatpush2.msra.mxu0 0.0
    %1304 = vmatprep.subr.mxu0 0.0
    %1305 = vmatpush2.msra.mxu0 0.0
    %1306 = vmatprep.subr.mxu0 0.0
    %1307 = vmatpush2.msra.mxu0 0.0
    %1308 = vmatprep.subr.mxu0 0.0
    %1309 = vmatpush2.msra.mxu0 0.0
    %1310 = vmatprep.subr.mxu0 0.0
    %1311 = vmatpush2.msra.mxu0 0.0
    %1312 = vmatprep.subr.mxu0 0.0
    %1313 = vmatpush2.msra.mxu0 0.0
    %1314 = vmatprep.subr.mxu0 0.0
    %1315 = vmatpush2.msra.mxu0 0.0
    %1316 = vmatprep.subr.mxu0 0.0
    %1317 = vmatpush2.msra.mxu0 0.0
    %1318 = vmatprep.subr.mxu0 0.0
    %1319 = vmatpush2.msra.mxu0 0.0
    %1320 = vmatprep.subr.mxu0 0.0
    %1321 = vmatpush2.msra.mxu0 0.0
    %1322 = vmatprep.subr.mxu0 0.0
    %1323 = vmatpush2.msra.mxu0 0.0
    %1324 = vmatprep.subr.mxu0 0.0
    %1325 = vmatpush2.msra.mxu0 0.0
    %1326 = vmatprep.subr.mxu0 0.0
    %1327 = vmatpush2.msra.mxu0 0.0
    %1328 = vmatprep.subr.mxu0 0.0
    %1329 = vmatpush2.msra.mxu0 %v1248
    %1330 = vmatprep.subr.mxu0 0.0
    %1331 = vmatpush2.msra.mxu0 %v1247
    %1332 = vmatprep.mubr.f32.mxu0 %v1257
    %1333 = vmatmul.mubr.f32.gmra.mxu0 %v1223
    %v1334 = vpop.f32.mrf.mxu0
    %v1335 = vadd.f32 %v1254, %v1334
    %v1336 = vpop.f32.mrf.mxu0
    %1337 = vmatprep.mubr.f32.mxu0 %v1260
    %1338 = vmatmul.mubr.f32.gmra.mxu0 %v1225
    %v1339 = vpop.f32.mrf.mxu0
    %v1340 = vadd.f32 %v1254, %v1339
    %v1341 = vpop.f32.mrf.mxu0
    %1342 = vmatprep.mubr.f32.mxu0 %v1263
    %1343 = vmatmul.mubr.f32.gmra.mxu0 %v1227
    %v1344 = vpop.f32.mrf.mxu0
    %v1345 = vadd.f32 %v1254, %v1344
    %v1346 = vpop.f32.mrf.mxu0
    %1347 = vmatprep.mubr.f32.mxu0 %v1266
    %1348 = vmatmul.mubr.f32.gmra.mxu0 %v1229
    %v1349 = vpop.f32.mrf.mxu0
    %v1350 = vadd.f32 %v1254, %v1349
    %v1351 = vpop.f32.mrf.mxu0
    %1352 = vdwg.mxu0
    %v1353 = vmax.f32 %v1335, 0.0
    %v1354 = vmax.f32 %v1340, 0.0
    %v1355 = vmax.f32 %v1345, 0.0
    %v1356 = vmax.f32 %v1350, 0.0
    %1357 = vst [vmem:[#allocation3] sm:$0xff] %v1353
    %1358 = vst [vmem:[#allocation3 + $0x8] sm:$0xff] %v1354
    %1359 = vst [vmem:[#allocation3 + $0x10] sm:$0xff] %v1355
    %1360 = vst [vmem:[#allocation3 + $0x18] sm:$0xff] %v1356
    // Predicated region
    $region26: #{timm_feature_extractor_wrapper_forward.1} parent=1 // pred_check
      _
    $region27: #{timm_feature_extractor_wrapper_forward.1} parent=1 // pred_check_branch
      %1362 = sbr.rel (0) target = $region29
    $region28: #{timm_feature_extractor_wrapper_forward.1} parent=1 // pred_region
      %s1364 = ssub.s32 512, 512
      %1365 = vsyncadd [#allocation4], %s1364
      %s1366 = sshll.u32 [#allocation3], 4
      %s1367 = int_to_ptr.vmem [resolvable:$true] %s1366
      %1372 = dma.vmem_to_hbm [thread:$0]  %s1367, 512, %s6, [#allocation4], 128, 128, 8
    $region29: #{timm_feature_extractor_wrapper_forward.1} parent=1 // pred_fallthru
      _
    // Predicated region
    $region30: #{timm_feature_extractor_wrapper_forward.1} parent=1 // pred_check
      _
    $region31: #{timm_feature_extractor_wrapper_forward.1} parent=1 // pred_check_branch
      %1374 = sbr.rel (0) target = $region33
    $region32: #{timm_feature_extractor_wrapper_forward.1} parent=1 // pred_region
      %1375 = dma.done [#allocation4], 512
    $region33: #{timm_feature_extractor_wrapper_forward.1} parent=1 // pred_fallthru
      _
    %1376 = vsyncpa [#allocation4], 1

</llo_original>
